<compile_context>
chip_gen: v7x
topology: tpu7x:2x2x1
jax: 0.10.0
libtpu: 0.0.40
codegen_flags: <defaults>
</compile_context>

<pallas_src>
import functools

import numpy as np
import jax
import jax.numpy as jnp
from jax import lax
from jax.experimental import pallas as pl
from jax.experimental.pallas import tpu as pltpu


class Flags:
    # flags.linear[0] must equal the conv stack's output length.
    linear = [16, 32, 32, 8]
    conv_kernel_size = [5, 3]
    conv_stride = [1, 1]


_EPS = 1e-5  # PyTorch BatchNorm1d default


# ----------------------------- fused kernel ----------------------------------


def _make_fused_kernel(n_conv, n_linear, eps):
    """Single fused kernel: Toeplitz convs + (Linear -> BN -> ReLU)* + Linear."""

    def kernel(*refs):
        it = iter(refs)
        g_ref = next(it)
        conv_refs = [(next(it), next(it)) for _ in range(n_conv)]        # (T, bias)
        lin_refs = []
        for li in range(n_linear):
            w_ref, b_ref = next(it), next(it)
            if li != n_linear - 1:
                gma_ref, bta_ref = next(it), next(it)
            else:
                gma_ref = bta_ref = None
            lin_refs.append((w_ref, b_ref, gma_ref, bta_ref))
        o_ref = next(it)

        x = g_ref[...].astype(jnp.float32)                                # [B, L]

        # Conv1d(1,1,k,s) + ReLU as small Toeplitz matmuls on the MXU
        # (bias is a single scalar per conv, read from SMEM).
        for t_ref, cb_ref in conv_refs:
            x = jnp.maximum(
                jnp.dot(x, t_ref[...], preferred_element_type=jnp.float32)
                + cb_ref[0],
                0.0)

        # Linear -> train-mode BatchNorm1d (exact two-pass stats) -> ReLU;
        # last Linear has no BN/ReLU.
        for li, (w_ref, b_ref, gma_ref, bta_ref) in enumerate(lin_refs):
            y = jnp.dot(x, w_ref[...],
                        preferred_element_type=jnp.float32) + b_ref[...]
            if li != n_linear - 1:
                mean = jnp.mean(y, axis=0, keepdims=True)
                var = jnp.mean((y - mean) ** 2, axis=0, keepdims=True)    # biased
                scale = gma_ref[...] * lax.rsqrt(var + eps)               # EUP
                x = jnp.maximum((y - mean) * scale + bta_ref[...], 0.0)
            else:
                x = y

        o_ref[...] = x                                                    # [B, out]

    return kernel


# ----------------------------- wrapper ---------------------------------------


def _conv_toeplitz(w, l_in, k, s):
    """Band matrix T [l_in, l_out] such that (x @ T)[:, j] = sum_i w[i]*x[:, j*s+i]."""
    l_out = (l_in - k) // s + 1
    rows = jnp.arange(l_in)[:, None]
    cols = jnp.arange(l_out)[None, :]
    tap = rows - cols * s
    mask = (tap >= 0) & (tap < k)
    return jnp.where(mask, w[jnp.clip(tap, 0, k - 1)], 0.0).astype(jnp.float32)


@functools.partial(jax.jit, static_argnames=("conv_cfg",))
def forward_pallas(G, conv_ws, conv_bs, lin_ws, lin_bs, bn_gammas, bn_betas,
                   conv_cfg):
    B, L_in = G.shape
    n_conv = len(conv_cfg)
    n_linear = len(lin_ws)
    out_dim = lin_ws[-1].shape[1]

    vmem = pl.BlockSpec(memory_space=pltpu.MemorySpace.VMEM)
    smem = pl.BlockSpec(memory_space=pltpu.MemorySpace.SMEM)

    args, specs = [G], [vmem]

    # Conv taps -> Toeplitz band matrices (supports any stride), scalar bias in SMEM.
    l_cur = L_in
    for (k, s), cw, cb in zip(conv_cfg, conv_ws, conv_bs):
        args += [_conv_toeplitz(cw.astype(jnp.float32), l_cur, k, s),
                 cb.reshape(-1).astype(jnp.float32)]
        specs += [vmem, smem]
        l_cur = (l_cur - k) // s + 1
    assert l_cur == lin_ws[0].shape[0], "conv output length must equal linear[0]"

    # Linear weights/biases and BN gamma/beta — all VMEM-resident (tiny).
    for li in range(n_linear):
        args += [lin_ws[li].astype(jnp.float32), lin_bs[li].astype(jnp.float32)]
        specs += [vmem, vmem]
        if li != n_linear - 1:
            args += [bn_gammas[li].astype(jnp.float32),
                     bn_betas[li].astype(jnp.float32)]
            specs += [vmem, vmem]

    return pl.pallas_call(
        _make_fused_kernel(n_conv, n_linear, _EPS),
        out_shape=jax.ShapeDtypeStruct((B, out_dim), jnp.float32),
        in_specs=specs,
        out_specs=vmem,
    )(*args)


# ----------------------------- reference -------------------------------------


def forward_ref(G, conv_ws, conv_bs, lin_ws, lin_bs, bn_gammas, bn_betas,
                conv_cfg):
    """Pure-JAX reference with identical (PyTorch train-mode) semantics."""
    x = G.astype(jnp.float32)
    for (k, s), w, b in zip(conv_cfg, conv_ws, conv_bs):
        bsz, length = x.shape
        l_out = (length - k) // s + 1
        acc = jnp.zeros((bsz, l_out), jnp.float32) + b[0]
        for j in range(k):
            acc = acc + w[j] * x[:, j:j + s * (l_out - 1) + 1:s]
        x = jnp.maximum(acc, 0.0)
    n = len(lin_ws)
    for li in range(n):
        y = jnp.dot(x, lin_ws[li], precision=lax.Precision.HIGHEST) + lin_bs[li]
        if li != n - 1:
            mean = jnp.mean(y, axis=0, keepdims=True)
            var = jnp.mean((y - mean) ** 2, axis=0, keepdims=True)
            y = (y - mean) / jnp.sqrt(var + _EPS)
            y = y * bn_gammas[li] + bn_betas[li]
            y = jnp.maximum(y, 0.0)
        x = y
    return x


# ----------------------------- main -------------------------------------------


if __name__ == "__main__":
    flags = Flags()
    conv_cfg = tuple(zip(flags.conv_kernel_size, flags.conv_stride))  # static/hashable

    B = 256        # whole batch is one VMEM-resident block (fused single kernel)
    L_in = 22      # 22 --(k=5,s=1)--> 18 --(k=3,s=1)--> 16 == flags.linear[0]

    key = jax.random.PRNGKey(0)
    keys = iter(jax.random.split(key, 64))

    G = jax.random.normal(next(keys), (B, L_in), dtype=jnp.float32)

    # Deterministic synthetic parameters (shapes match the PyTorch module).
    conv_ws, conv_bs = [], []
    for k, s in conv_cfg:
        conv_ws.append(0.3 * jax.random.normal(next(keys), (k,), jnp.float32))
        conv_bs.append(0.1 * jax.random.normal(next(keys), (1,), jnp.float32))

    lin_ws, lin_bs, bn_gammas, bn_betas = [], [], [], []
    dims = flags.linear
    for li in range(len(dims) - 1):
        fan_in, fan_out = dims[li], dims[li + 1]
        # stored pre-transposed: [in, out]  (PyTorch Linear.weight is [out, in])
        lin_ws.append(jax.random.normal(next(keys), (fan_in, fan_out),
                                        jnp.float32) / np.sqrt(fan_in))
        lin_bs.append(0.1 * jax.random.normal(next(keys), (1, fan_out),
                                              jnp.float32))
        if li != len(dims) - 2:
            bn_gammas.append(1.0 + 0.1 * jax.random.normal(
                next(keys), (1, fan_out), jnp.float32))
            bn_betas.append(0.1 * jax.random.normal(
                next(keys), (1, fan_out), jnp.float32))

    ref = forward_ref(G, conv_ws, conv_bs, lin_ws, lin_bs,
                      bn_gammas, bn_betas, conv_cfg)
    ref = np.asarray(jax.block_until_ready(ref))

    out = forward_pallas(G, conv_ws, conv_bs, lin_ws, lin_bs,
                         bn_gammas, bn_betas, conv_cfg)
    out = np.asarray(jax.block_until_ready(out))
    np.testing.assert_allclose(out, ref, rtol=5e-4, atol=5e-4)

    print("KERNEL_OK")
</pallas_src>

<mosaic_0001>
module attributes {stable_mosaic.version = 11 : i64} {
  func.func @kernel(%arg0: memref<256x22xf32, #tpu.memory_space<vmem>>, %arg1: memref<22x18xf32, #tpu.memory_space<vmem>>, %arg2: memref<1xf32, #tpu.memory_space<smem>>, %arg3: memref<18x16xf32, #tpu.memory_space<vmem>>, %arg4: memref<1xf32, #tpu.memory_space<smem>>, %arg5: memref<16x32xf32, #tpu.memory_space<vmem>>, %arg6: memref<1x32xf32, #tpu.memory_space<vmem>>, %arg7: memref<1x32xf32, #tpu.memory_space<vmem>>, %arg8: memref<1x32xf32, #tpu.memory_space<vmem>>, %arg9: memref<32x32xf32, #tpu.memory_space<vmem>>, %arg10: memref<1x32xf32, #tpu.memory_space<vmem>>, %arg11: memref<1x32xf32, #tpu.memory_space<vmem>>, %arg12: memref<1x32xf32, #tpu.memory_space<vmem>>, %arg13: memref<32x8xf32, #tpu.memory_space<vmem>>, %arg14: memref<1x8xf32, #tpu.memory_space<vmem>>, %arg15: memref<256x8xf32, #tpu.memory_space<vmem>>) attributes {dimension_semantics = [], scalar_prefetch = 0 : i64, scratch_operands = 0 : i64, tpu.core_type = #tpu.core_type<tc>} {
    %c0 = arith.constant 0 : index
    %c0_0 = arith.constant 0 : index
    %0 = vector.load %arg0[%c0, %c0_0] : memref<256x22xf32, #tpu.memory_space<vmem>>, vector<256x22xf32>
    %c0_1 = arith.constant 0 : index
    %c0_2 = arith.constant 0 : index
    %1 = vector.load %arg1[%c0_1, %c0_2] : memref<22x18xf32, #tpu.memory_space<vmem>>, vector<22x18xf32>
    %cst = arith.constant dense<0.000000e+00> : vector<256x18xf32>
    %2 = tpu.matmul %0, %1, %cst {dimension_numbers = #tpu.dot_dimension_numbers<[1], [0], [0], [1], [0, 0, 1, 1], [], []>} : vector<256x22xf32>, vector<22x18xf32>, vector<256x18xf32> -> vector<256x18xf32>
    %c0_3 = arith.constant 0 : index
    %3 = memref.load %arg2[%c0_3] : memref<1xf32, #tpu.memory_space<smem>>
    %4 = vector.broadcast %3 : f32 to vector<256x18xf32>
    %5 = arith.addf %2, %4 : vector<256x18xf32>
    %cst_4 = arith.constant 0.000000e+00 : f32
    %6 = vector.broadcast %cst_4 : f32 to vector<256x18xf32>
    %7 = arith.maximumf %5, %6 : vector<256x18xf32>
    %c0_5 = arith.constant 0 : index
    %c0_6 = arith.constant 0 : index
    %8 = vector.load %arg3[%c0_5, %c0_6] : memref<18x16xf32, #tpu.memory_space<vmem>>, vector<18x16xf32>
    %cst_7 = arith.constant dense<0.000000e+00> : vector<256x16xf32>
    %9 = tpu.matmul %7, %8, %cst_7 {dimension_numbers = #tpu.dot_dimension_numbers<[1], [0], [0], [1], [0, 0, 1, 1], [], []>} : vector<256x18xf32>, vector<18x16xf32>, vector<256x16xf32> -> vector<256x16xf32>
    %c0_8 = arith.constant 0 : index
    %10 = memref.load %arg4[%c0_8] : memref<1xf32, #tpu.memory_space<smem>>
    %11 = vector.broadcast %10 : f32 to vector<256x16xf32>
    %12 = arith.addf %9, %11 : vector<256x16xf32>
    %cst_9 = arith.constant 0.000000e+00 : f32
    %13 = vector.broadcast %cst_9 : f32 to vector<256x16xf32>
    %14 = arith.maximumf %12, %13 : vector<256x16xf32>
    %c0_10 = arith.constant 0 : index
    %c0_11 = arith.constant 0 : index
    %15 = vector.load %arg5[%c0_10, %c0_11] : memref<16x32xf32, #tpu.memory_space<vmem>>, vector<16x32xf32>
    %cst_12 = arith.constant dense<0.000000e+00> : vector<256x32xf32>
    %16 = tpu.matmul %14, %15, %cst_12 {dimension_numbers = #tpu.dot_dimension_numbers<[1], [0], [0], [1], [0, 0, 1, 1], [], []>} : vector<256x16xf32>, vector<16x32xf32>, vector<256x32xf32> -> vector<256x32xf32>
    %c0_13 = arith.constant 0 : index
    %c0_14 = arith.constant 0 : index
    %17 = vector.load %arg6[%c0_13, %c0_14] : memref<1x32xf32, #tpu.memory_space<vmem>>, vector<1x32xf32>
    %18 = vector.broadcast %17 : vector<1x32xf32> to vector<256x32xf32>
    %19 = arith.addf %16, %18 : vector<256x32xf32>
    %cst_15 = arith.constant dense<0.000000e+00> : vector<32xf32>
    %20 = vector.multi_reduction <add>, %19, %cst_15 [0] : vector<256x32xf32> to vector<32xf32>
    %21 = vector.shape_cast %20 : vector<32xf32> to vector<1x32xf32>
    %cst_16 = arith.constant 2.560000e+02 : f32
    %22 = vector.broadcast %cst_16 : f32 to vector<1x32xf32>
    %23 = arith.divf %21, %22 : vector<1x32xf32>
    %24 = vector.broadcast %23 : vector<1x32xf32> to vector<256x32xf32>
    %25 = arith.subf %19, %24 : vector<256x32xf32>
    %26 = arith.mulf %25, %25 : vector<256x32xf32>
    %cst_17 = arith.constant dense<0.000000e+00> : vector<32xf32>
    %27 = vector.multi_reduction <add>, %26, %cst_17 [0] : vector<256x32xf32> to vector<32xf32>
    %28 = vector.shape_cast %27 : vector<32xf32> to vector<1x32xf32>
    %cst_18 = arith.constant 2.560000e+02 : f32
    %29 = vector.broadcast %cst_18 : f32 to vector<1x32xf32>
    %30 = arith.divf %28, %29 : vector<1x32xf32>
    %c0_19 = arith.constant 0 : index
    %c0_20 = arith.constant 0 : index
    %31 = vector.load %arg7[%c0_19, %c0_20] : memref<1x32xf32, #tpu.memory_space<vmem>>, vector<1x32xf32>
    %cst_21 = arith.constant 9.99999974E-6 : f32
    %32 = vector.broadcast %cst_21 : f32 to vector<1x32xf32>
    %33 = arith.addf %30, %32 : vector<1x32xf32>
    %34 = math.rsqrt %33 : vector<1x32xf32>
    %35 = arith.mulf %31, %34 : vector<1x32xf32>
    %36 = vector.broadcast %23 : vector<1x32xf32> to vector<256x32xf32>
    %37 = arith.subf %19, %36 : vector<256x32xf32>
    %38 = vector.broadcast %35 : vector<1x32xf32> to vector<256x32xf32>
    %39 = arith.mulf %37, %38 : vector<256x32xf32>
    %c0_22 = arith.constant 0 : index
    %c0_23 = arith.constant 0 : index
    %40 = vector.load %arg8[%c0_22, %c0_23] : memref<1x32xf32, #tpu.memory_space<vmem>>, vector<1x32xf32>
    %41 = vector.broadcast %40 : vector<1x32xf32> to vector<256x32xf32>
    %42 = arith.addf %39, %41 : vector<256x32xf32>
    %cst_24 = arith.constant 0.000000e+00 : f32
    %43 = vector.broadcast %cst_24 : f32 to vector<256x32xf32>
    %44 = arith.maximumf %42, %43 : vector<256x32xf32>
    %c0_25 = arith.constant 0 : index
    %c0_26 = arith.constant 0 : index
    %45 = vector.load %arg9[%c0_25, %c0_26] : memref<32x32xf32, #tpu.memory_space<vmem>>, vector<32x32xf32>
    %cst_27 = arith.constant dense<0.000000e+00> : vector<256x32xf32>
    %46 = tpu.matmul %44, %45, %cst_27 {dimension_numbers = #tpu.dot_dimension_numbers<[1], [0], [0], [1], [0, 0, 1, 1], [], []>} : vector<256x32xf32>, vector<32x32xf32>, vector<256x32xf32> -> vector<256x32xf32>
    %c0_28 = arith.constant 0 : index
    %c0_29 = arith.constant 0 : index
    %47 = vector.load %arg10[%c0_28, %c0_29] : memref<1x32xf32, #tpu.memory_space<vmem>>, vector<1x32xf32>
    %48 = vector.broadcast %47 : vector<1x32xf32> to vector<256x32xf32>
    %49 = arith.addf %46, %48 : vector<256x32xf32>
    %cst_30 = arith.constant dense<0.000000e+00> : vector<32xf32>
    %50 = vector.multi_reduction <add>, %49, %cst_30 [0] : vector<256x32xf32> to vector<32xf32>
    %51 = vector.shape_cast %50 : vector<32xf32> to vector<1x32xf32>
    %cst_31 = arith.constant 2.560000e+02 : f32
    %52 = vector.broadcast %cst_31 : f32 to vector<1x32xf32>
    %53 = arith.divf %51, %52 : vector<1x32xf32>
    %54 = vector.broadcast %53 : vector<1x32xf32> to vector<256x32xf32>
    %55 = arith.subf %49, %54 : vector<256x32xf32>
    %56 = arith.mulf %55, %55 : vector<256x32xf32>
    %cst_32 = arith.constant dense<0.000000e+00> : vector<32xf32>
    %57 = vector.multi_reduction <add>, %56, %cst_32 [0] : vector<256x32xf32> to vector<32xf32>
    %58 = vector.shape_cast %57 : vector<32xf32> to vector<1x32xf32>
    %cst_33 = arith.constant 2.560000e+02 : f32
    %59 = vector.broadcast %cst_33 : f32 to vector<1x32xf32>
    %60 = arith.divf %58, %59 : vector<1x32xf32>
    %c0_34 = arith.constant 0 : index
    %c0_35 = arith.constant 0 : index
    %61 = vector.load %arg11[%c0_34, %c0_35] : memref<1x32xf32, #tpu.memory_space<vmem>>, vector<1x32xf32>
    %cst_36 = arith.constant 9.99999974E-6 : f32
    %62 = vector.broadcast %cst_36 : f32 to vector<1x32xf32>
    %63 = arith.addf %60, %62 : vector<1x32xf32>
    %64 = math.rsqrt %63 : vector<1x32xf32>
    %65 = arith.mulf %61, %64 : vector<1x32xf32>
    %66 = vector.broadcast %53 : vector<1x32xf32> to vector<256x32xf32>
    %67 = arith.subf %49, %66 : vector<256x32xf32>
    %68 = vector.broadcast %65 : vector<1x32xf32> to vector<256x32xf32>
    %69 = arith.mulf %67, %68 : vector<256x32xf32>
    %c0_37 = arith.constant 0 : index
    %c0_38 = arith.constant 0 : index
    %70 = vector.load %arg12[%c0_37, %c0_38] : memref<1x32xf32, #tpu.memory_space<vmem>>, vector<1x32xf32>
    %71 = vector.broadcast %70 : vector<1x32xf32> to vector<256x32xf32>
    %72 = arith.addf %69, %71 : vector<256x32xf32>
    %cst_39 = arith.constant 0.000000e+00 : f32
    %73 = vector.broadcast %cst_39 : f32 to vector<256x32xf32>
    %74 = arith.maximumf %72, %73 : vector<256x32xf32>
    %c0_40 = arith.constant 0 : index
    %c0_41 = arith.constant 0 : index
    %75 = vector.load %arg13[%c0_40, %c0_41] : memref<32x8xf32, #tpu.memory_space<vmem>>, vector<32x8xf32>
    %cst_42 = arith.constant dense<0.000000e+00> : vector<256x8xf32>
    %76 = tpu.matmul %74, %75, %cst_42 {dimension_numbers = #tpu.dot_dimension_numbers<[1], [0], [0], [1], [0, 0, 1, 1], [], []>} : vector<256x32xf32>, vector<32x8xf32>, vector<256x8xf32> -> vector<256x8xf32>
    %c0_43 = arith.constant 0 : index
    %c0_44 = arith.constant 0 : index
    %77 = vector.load %arg14[%c0_43, %c0_44] : memref<1x8xf32, #tpu.memory_space<vmem>>, vector<1x8xf32>
    %78 = vector.broadcast %77 : vector<1x8xf32> to vector<256x8xf32>
    %79 = arith.addf %76, %78 : vector<256x8xf32>
    %c0_45 = arith.constant 0 : index
    %c0_46 = arith.constant 0 : index
    %80 = vector.load %arg15[%c0_45, %c0_46] : memref<256x8xf32, #tpu.memory_space<vmem>>, vector<256x8xf32>
    tpu.vector_store %arg15[%c0_45, %c0_46], %79 {strides = array<i32>} : memref<256x8xf32, #tpu.memory_space<vmem>>, vector<256x8xf32>,
    return
  }
}

</mosaic_0001>

<llo_original>
// kernel: forward_pallas.1
$region0: #{forward_pallas.1}
  #allocation0 [shape = 'u32[]', space=smem, size = 0x4, offset = 0x4, fixed_abs, tag = 'smem constant byte address 0x4 - core index']
  #allocation1 [shape = 'u32[144,128]{1,0:T(1,128)}', space=vmem, size = 0x12000, scoped, tag = 'internal scratch']
  #allocation2 [shape = 'f32[1]{0:T(128)S(6)}', space=smem, size = 0x200, scoped, tag = 'scoped memory for forward_pallas.1']
  #allocation3 [shape = 'f32[1]{0:T(128)S(6)}', space=smem, size = 0x200, scoped, tag = 'scoped memory for forward_pallas.1']
  %s0 = inlined_call_operand.vmem [shape: f32[256,22], index: 0, kind: input, shape index: {}]
  %s1 = inlined_call_operand.vmem [shape: f32[22,18], index: 1, kind: input, shape index: {}]
  %s2 = inlined_call_operand.<no memory space> [shape: f32[1], index: 2, kind: input, shape index: {}]
  %s3 = inlined_call_operand.vmem [shape: f32[18,16], index: 3, kind: input, shape index: {}]
  %s4 = inlined_call_operand.<no memory space> [shape: f32[1], index: 4, kind: input, shape index: {}]
  %s5 = inlined_call_operand.vmem [shape: f32[16,32], index: 5, kind: input, shape index: {}]
  %s6 = inlined_call_operand.vmem [shape: f32[1,32], index: 6, kind: input, shape index: {}]
  %s7 = inlined_call_operand.vmem [shape: f32[1,32], index: 7, kind: input, shape index: {}]
  %s8 = inlined_call_operand.vmem [shape: f32[1,32], index: 8, kind: input, shape index: {}]
  %s9 = inlined_call_operand.vmem [shape: f32[32,32], index: 9, kind: input, shape index: {}]
  %s10 = inlined_call_operand.vmem [shape: f32[1,32], index: 10, kind: input, shape index: {}]
  %s11 = inlined_call_operand.vmem [shape: f32[1,32], index: 11, kind: input, shape index: {}]
  %s12 = inlined_call_operand.vmem [shape: f32[1,32], index: 12, kind: input, shape index: {}]
  %s13 = inlined_call_operand.vmem [shape: f32[32,8], index: 13, kind: input, shape index: {}]
  %s14 = inlined_call_operand.vmem [shape: f32[1,8], index: 14, kind: input, shape index: {}]
  %s15 = inlined_call_operand.vmem [shape: f32[256,8], index: 15, kind: output, shape index: {}]
  %s16 = sld [smem:[#allocation0]]
  $region70: #{forward_pallas.1} parent=0
    _
  %s18 = ssub.s32 1, %s16
  %s19 = scalar_select 0, %s18, %s16
  %20 = sst [smem:[#allocation2]] %s2
  %21 = sst [smem:[#allocation3]] %s4
  // Predicated region
  $region2: #{forward_pallas.1} parent=0 // pred_check
    _
  $region3: #{forward_pallas.1} parent=0 // pred_check_branch
    %23 = sbr.rel (0) target = $region5
  $region4: #{forward_pallas.1} parent=0 // pred_region
    _
  $region5: #{forward_pallas.1} parent=0 // pred_fallthru
    _
  // Predicated region
  $region6: #{forward_pallas.1} parent=0 // pred_check
    _
  $region7: #{forward_pallas.1} parent=0 // pred_check_branch
    %25 = sbr.rel (0) target = $region9
  $region8: #{forward_pallas.1} parent=0 // pred_region
    _
  $region9: #{forward_pallas.1} parent=0 // pred_fallthru
    _
  // Predicated region
  $region10: #{forward_pallas.1} parent=0 // pred_check
    _
  $region11: #{forward_pallas.1} parent=0 // pred_check_branch
    %27 = sbr.rel (0) target = $region13
  $region12: #{forward_pallas.1} parent=0 // pred_region
    _
  $region13: #{forward_pallas.1} parent=0 // pred_fallthru
    _
  // Predicated region
  $region14: #{forward_pallas.1} parent=0 // pred_check
    _
  $region15: #{forward_pallas.1} parent=0 // pred_check_branch
    %29 = sbr.rel (0) target = $region17
  $region16: #{forward_pallas.1} parent=0 // pred_region
    _
  $region17: #{forward_pallas.1} parent=0 // pred_fallthru
    _
  // Predicated region
  $region18: #{forward_pallas.1} parent=0 // pred_check
    _
  $region19: #{forward_pallas.1} parent=0 // pred_check_branch
    %31 = sbr.rel (0) target = $region21
  $region20: #{forward_pallas.1} parent=0 // pred_region
    _
  $region21: #{forward_pallas.1} parent=0 // pred_fallthru
    _
  // Predicated region
  $region22: #{forward_pallas.1} parent=0 // pred_check
    _
  $region23: #{forward_pallas.1} parent=0 // pred_check_branch
    %33 = sbr.rel (0) target = $region25
  $region24: #{forward_pallas.1} parent=0 // pred_region
    _
  $region25: #{forward_pallas.1} parent=0 // pred_fallthru
    _
  // Predicated region
  $region26: #{forward_pallas.1} parent=0 // pred_check
    _
  $region27: #{forward_pallas.1} parent=0 // pred_check_branch
    %35 = sbr.rel (0) target = $region29
  $region28: #{forward_pallas.1} parent=0 // pred_region
    _
  $region29: #{forward_pallas.1} parent=0 // pred_fallthru
    _
  // Predicated region
  $region30: #{forward_pallas.1} parent=0 // pred_check
    _
  $region31: #{forward_pallas.1} parent=0 // pred_check_branch
    %37 = sbr.rel (0) target = $region33
  $region32: #{forward_pallas.1} parent=0 // pred_region
    _
  $region33: #{forward_pallas.1} parent=0 // pred_fallthru
    _
  // Predicated region
  $region34: #{forward_pallas.1} parent=0 // pred_check
    _
  $region35: #{forward_pallas.1} parent=0 // pred_check_branch
    %39 = sbr.rel (0) target = $region37
  $region36: #{forward_pallas.1} parent=0 // pred_region
    _
  $region37: #{forward_pallas.1} parent=0 // pred_fallthru
    _
  // Predicated region
  $region38: #{forward_pallas.1} parent=0 // pred_check
    _
  $region39: #{forward_pallas.1} parent=0 // pred_check_branch
    %41 = sbr.rel (0) target = $region41
  $region40: #{forward_pallas.1} parent=0 // pred_region
    _
  $region41: #{forward_pallas.1} parent=0 // pred_fallthru
    _
  // Predicated region
  $region42: #{forward_pallas.1} parent=0 // pred_check
    _
  $region43: #{forward_pallas.1} parent=0 // pred_check_branch
    %43 = sbr.rel (0) target = $region45
  $region44: #{forward_pallas.1} parent=0 // pred_region
    _
  $region45: #{forward_pallas.1} parent=0 // pred_fallthru
    _
  // Predicated region
  $region46: #{forward_pallas.1} parent=0 // pred_check
    _
  $region47: #{forward_pallas.1} parent=0 // pred_check_branch
    %45 = sbr.rel (0) target = $region49
  $region48: #{forward_pallas.1} parent=0 // pred_region
    _
  $region49: #{forward_pallas.1} parent=0 // pred_fallthru
    _
  // Predicated region
  $region50: #{forward_pallas.1} parent=0 // pred_check
    _
  $region51: #{forward_pallas.1} parent=0 // pred_check_branch
    %47 = sbr.rel (0) target = $region53
  $region52: #{forward_pallas.1} parent=0 // pred_region
    _
  $region53: #{forward_pallas.1} parent=0 // pred_fallthru
    _
  // Predicated region
  $region54: #{forward_pallas.1} parent=0 // pred_check
    _
  $region55: #{forward_pallas.1} parent=0 // pred_check_branch
    %49 = sbr.rel (0) target = $region57
  $region56: #{forward_pallas.1} parent=0 // pred_region
    _
  $region57: #{forward_pallas.1} parent=0 // pred_fallthru
    _
  // Predicated region
  $region58: #{forward_pallas.1} parent=0 // pred_check
    _
  $region59: #{forward_pallas.1} parent=0 // pred_check_branch
    %51 = sbr.rel (0) target = $region61
  $region60: #{forward_pallas.1} parent=0 // pred_region
    _
  $region61: #{forward_pallas.1} parent=0 // pred_fallthru
    _
  %v52 = vld [vmem:[%s0] sm:$0xff]
  %v53 = vld [vmem:[%s0 + $0x8] sm:$0xff]
  %v54 = vld [vmem:[%s0 + $0x10] sm:$0xff]
  %v55 = vld [vmem:[%s0 + $0x18] sm:$0xff]
  %v56 = vld [vmem:[%s0 + $0x20] sm:$0xff]
  %v57 = vld [vmem:[%s0 + $0x28] sm:$0xff]
  %v58 = vld [vmem:[%s0 + $0x30] sm:$0xff]
  %v59 = vld [vmem:[%s0 + $0x38] sm:$0xff]
  %v60 = vld [vmem:[%s0 + $0x40] sm:$0xff]
  %v61 = vld [vmem:[%s0 + $0x48] sm:$0xff]
  %v62 = vld [vmem:[%s0 + $0x50] sm:$0xff]
  %v63 = vld [vmem:[%s0 + $0x58] sm:$0xff]
  %v64 = vld [vmem:[%s0 + $0x60] sm:$0xff]
  %v65 = vld [vmem:[%s0 + $0x68] sm:$0xff]
  %v66 = vld [vmem:[%s0 + $0x70] sm:$0xff]
  %v67 = vld [vmem:[%s0 + $0x78] sm:$0xff]
  %v68 = vld [vmem:[%s0 + $0x80] sm:$0xff]
  %v69 = vld [vmem:[%s0 + $0x88] sm:$0xff]
  %v70 = vld [vmem:[%s0 + $0x90] sm:$0xff]
  %v71 = vld [vmem:[%s0 + $0x98] sm:$0xff]
  %v72 = vld [vmem:[%s0 + $0xa0] sm:$0xff]
  %v73 = vld [vmem:[%s0 + $0xa8] sm:$0xff]
  %v74 = vld [vmem:[%s0 + $0xb0] sm:$0xff]
  %v75 = vld [vmem:[%s0 + $0xb8] sm:$0xff]
  %v76 = vld [vmem:[%s0 + $0xc0] sm:$0xff]
  %v77 = vld [vmem:[%s0 + $0xc8] sm:$0xff]
  %v78 = vld [vmem:[%s0 + $0xd0] sm:$0xff]
  %v79 = vld [vmem:[%s0 + $0xd8] sm:$0xff]
  %v80 = vld [vmem:[%s0 + $0xe0] sm:$0xff]
  %v81 = vld [vmem:[%s0 + $0xe8] sm:$0xff]
  %v82 = vld [vmem:[%s0 + $0xf0] sm:$0xff]
  %v83 = vld [vmem:[%s0 + $0xf8] sm:$0xff]
  %v84 = vld [vmem:[%s1] sm:$0xff]
  %v85 = vld [vmem:[%s1 + $0x8] sm:$0xff]
  %v86 = vld [vmem:[%s1 + $0x10] sm:$0x3f]
  %s87 = sld [smem:[#allocation2]]
  %v88 = vstv %s87
  %vm89 = vcmask 179200
  %v91 = vsel %vm89, %v52, 0
  %v94 = vsel %vm89, %v53, 0
  %v97 = vsel %vm89, %v54, 0
  %v100 = vsel %vm89, %v55, 0
  %v103 = vsel %vm89, %v56, 0
  %v106 = vsel %vm89, %v57, 0
  %v109 = vsel %vm89, %v58, 0
  %v112 = vsel %vm89, %v59, 0
  %v115 = vsel %vm89, %v60, 0
  %v118 = vsel %vm89, %v61, 0
  %v121 = vsel %vm89, %v62, 0
  %v124 = vsel %vm89, %v63, 0
  %v127 = vsel %vm89, %v64, 0
  %v130 = vsel %vm89, %v65, 0
  %v133 = vsel %vm89, %v66, 0
  %v136 = vsel %vm89, %v67, 0
  %v139 = vsel %vm89, %v68, 0
  %v142 = vsel %vm89, %v69, 0
  %v145 = vsel %vm89, %v70, 0
  %v148 = vsel %vm89, %v71, 0
  %v151 = vsel %vm89, %v72, 0
  %v154 = vsel %vm89, %v73, 0
  %v157 = vsel %vm89, %v74, 0
  %v160 = vsel %vm89, %v75, 0
  %v163 = vsel %vm89, %v76, 0
  %v166 = vsel %vm89, %v77, 0
  %v169 = vsel %vm89, %v78, 0
  %v172 = vsel %vm89, %v79, 0
  %v175 = vsel %vm89, %v80, 0
  %v178 = vsel %vm89, %v81, 0
  %v181 = vsel %vm89, %v82, 0
  %v184 = vsel %vm89, %v83, 0
  %vm186 = vcmask 1045504
  %v188 = vsel %vm186, %v86, 0
  %190 = vmatprep.subr.mxu0 0.0
  %191 = vmatpush1.msra.mxu0 %v84
  %192 = vmatprep.subr.mxu0 0.0
  %193 = vmatpush1.msra.mxu0 %v85
  %194 = vmatprep.subr.mxu0 0.0
  %195 = vmatpush1.msra.mxu0 %v188
  %196 = vmatprep.subr.mxu0 0.0
  %197 = vmatpush1.msra.mxu0 0.0
  %198 = vmatprep.subr.mxu0 0.0
  %199 = vmatpush1.msra.mxu0 0.0
  %200 = vmatprep.subr.mxu0 0.0
  %201 = vmatpush1.msra.mxu0 0.0
  %202 = vmatprep.subr.mxu0 0.0
  %203 = vmatpush1.msra.mxu0 0.0
  %204 = vmatprep.subr.mxu0 0.0
  %205 = vmatpush1.msra.mxu0 0.0
  %206 = vmatprep.subr.mxu0 0.0
  %207 = vmatpush1.msra.mxu0 0.0
  %208 = vmatprep.subr.mxu0 0.0
  %209 = vmatpush1.msra.mxu0 0.0
  %210 = vmatprep.subr.mxu0 0.0
  %211 = vmatpush1.msra.mxu0 0.0
  %212 = vmatprep.subr.mxu0 0.0
  %213 = vmatpush1.msra.mxu0 0.0
  %214 = vmatprep.subr.mxu0 0.0
  %215 = vmatpush1.msra.mxu0 0.0
  %216 = vmatprep.subr.mxu0 0.0
  %217 = vmatpush1.msra.mxu0 0.0
  %218 = vmatprep.subr.mxu0 0.0
  %219 = vmatpush1.msra.mxu0 0.0
  %220 = vmatprep.subr.mxu0 0.0
  %221 = vmatpush1.msra.mxu0 0.0
  %222 = vmatprep.subr.mxu0 0.0
  %223 = vmatpush1.msra.mxu0 0.0
  %224 = vmatprep.subr.mxu0 0.0
  %225 = vmatpush1.msra.mxu0 0.0
  %226 = vmatprep.subr.mxu0 0.0
  %227 = vmatpush1.msra.mxu0 0.0
  %228 = vmatprep.subr.mxu0 0.0
  %229 = vmatpush1.msra.mxu0 0.0
  %230 = vmatprep.subr.mxu0 0.0
  %231 = vmatpush1.msra.mxu0 0.0
  %232 = vmatprep.subr.mxu0 0.0
  %233 = vmatpush1.msra.mxu0 0.0
  %234 = vmatprep.subr.mxu0 0.0
  %235 = vmatpush1.msra.mxu0 0.0
  %236 = vmatprep.subr.mxu0 0.0
  %237 = vmatpush1.msra.mxu0 0.0
  %238 = vmatprep.subr.mxu0 0.0
  %239 = vmatpush1.msra.mxu0 0.0
  %240 = vmatprep.subr.mxu0 0.0
  %241 = vmatpush1.msra.mxu0 0.0
  %242 = vmatprep.subr.mxu0 0.0
  %243 = vmatpush1.msra.mxu0 0.0
  %244 = vmatprep.subr.mxu0 0.0
  %245 = vmatpush1.msra.mxu0 0.0
  %246 = vmatprep.subr.mxu0 0.0
  %247 = vmatpush1.msra.mxu0 0.0
  %248 = vmatprep.subr.mxu0 0.0
  %249 = vmatpush1.msra.mxu0 0.0
  %250 = vmatprep.subr.mxu0 0.0
  %251 = vmatpush1.msra.mxu0 0.0
  %252 = vmatprep.subr.mxu0 0.0
  %253 = vmatpush1.msra.mxu0 0.0
  %254 = vmatprep.mubr.f32.mxu0 0.0
  %255 = vmatmul.mubr.f32.gmra.mrb[0].mxu0 %v91
  %v256 = vpop.f32.mrb[0].mxu0
  %v257 = vadd.f32 %v88, %v256
  %v258 = vpop.f32.mrb[0].mxu0
  %259 = vmatprep.mubr.f32.mxu0 0.0
  %260 = vmatmul.mubr.f32.gmra.mrb[0].mxu0 %v94
  %v261 = vpop.f32.mrb[0].mxu0
  %v262 = vadd.f32 %v88, %v261
  %v263 = vpop.f32.mrb[0].mxu0
  %264 = vmatprep.mubr.f32.mxu0 0.0
  %265 = vmatmul.mubr.f32.gmra.mrb[0].mxu0 %v97
  %v266 = vpop.f32.mrb[0].mxu0
  %v267 = vadd.f32 %v88, %v266
  %v268 = vpop.f32.mrb[0].mxu0
  %269 = vmatprep.mubr.f32.mxu0 0.0
  %270 = vmatmul.mubr.f32.gmra.mrb[0].mxu0 %v100
  %v271 = vpop.f32.mrb[0].mxu0
  %v272 = vadd.f32 %v88, %v271
  %v273 = vpop.f32.mrb[0].mxu0
  %274 = vmatprep.mubr.f32.mxu0 0.0
  %275 = vmatmul.mubr.f32.gmra.mrb[0].mxu0 %v103
  %v276 = vpop.f32.mrb[0].mxu0
  %v277 = vadd.f32 %v88, %v276
  %v278 = vpop.f32.mrb[0].mxu0
  %279 = vmatprep.mubr.f32.mxu0 0.0
  %280 = vmatmul.mubr.f32.gmra.mrb[0].mxu0 %v106
  %v281 = vpop.f32.mrb[0].mxu0
  %v282 = vadd.f32 %v88, %v281
  %v283 = vpop.f32.mrb[0].mxu0
  %284 = vmatprep.mubr.f32.mxu0 0.0
  %285 = vmatmul.mubr.f32.gmra.mrb[0].mxu0 %v109
  %v286 = vpop.f32.mrb[0].mxu0
  %v287 = vadd.f32 %v88, %v286
  %v288 = vpop.f32.mrb[0].mxu0
  %289 = vmatprep.mubr.f32.mxu0 0.0
  %290 = vmatmul.mubr.f32.gmra.mrb[0].mxu0 %v112
  %v291 = vpop.f32.mrb[0].mxu0
  %v292 = vadd.f32 %v88, %v291
  %v293 = vpop.f32.mrb[0].mxu0
  %294 = vmatprep.mubr.f32.mxu0 0.0
  %295 = vmatmul.mubr.f32.gmra.mrb[0].mxu0 %v115
  %v296 = vpop.f32.mrb[0].mxu0
  %v297 = vadd.f32 %v88, %v296
  %v298 = vpop.f32.mrb[0].mxu0
  %299 = vmatprep.mubr.f32.mxu0 0.0
  %300 = vmatmul.mubr.f32.gmra.mrb[0].mxu0 %v118
  %v301 = vpop.f32.mrb[0].mxu0
  %v302 = vadd.f32 %v88, %v301
  %v303 = vpop.f32.mrb[0].mxu0
  %304 = vmatprep.mubr.f32.mxu0 0.0
  %305 = vmatmul.mubr.f32.gmra.mrb[0].mxu0 %v121
  %v306 = vpop.f32.mrb[0].mxu0
  %v307 = vadd.f32 %v88, %v306
  %v308 = vpop.f32.mrb[0].mxu0
  %309 = vmatprep.mubr.f32.mxu0 0.0
  %310 = vmatmul.mubr.f32.gmra.mrb[0].mxu0 %v124
  %v311 = vpop.f32.mrb[0].mxu0
  %v312 = vadd.f32 %v88, %v311
  %v313 = vpop.f32.mrb[0].mxu0
  %314 = vmatprep.mubr.f32.mxu0 0.0
  %315 = vmatmul.mubr.f32.gmra.mrb[0].mxu0 %v127
  %v316 = vpop.f32.mrb[0].mxu0
  %v317 = vadd.f32 %v88, %v316
  %v318 = vpop.f32.mrb[0].mxu0
  %319 = vmatprep.mubr.f32.mxu0 0.0
  %320 = vmatmul.mubr.f32.gmra.mrb[0].mxu0 %v130
  %v321 = vpop.f32.mrb[0].mxu0
  %v322 = vadd.f32 %v88, %v321
  %v323 = vpop.f32.mrb[0].mxu0
  %324 = vmatprep.mubr.f32.mxu0 0.0
  %325 = vmatmul.mubr.f32.gmra.mrb[0].mxu0 %v133
  %v326 = vpop.f32.mrb[0].mxu0
  %v327 = vadd.f32 %v88, %v326
  %v328 = vpop.f32.mrb[0].mxu0
  %329 = vmatprep.mubr.f32.mxu0 0.0
  %330 = vmatmul.mubr.f32.gmra.mrb[0].mxu0 %v136
  %v331 = vpop.f32.mrb[0].mxu0
  %v332 = vadd.f32 %v88, %v331
  %v333 = vpop.f32.mrb[0].mxu0
  %334 = vmatprep.mubr.f32.mxu0 0.0
  %335 = vmatmul.mubr.f32.gmra.mrb[0].mxu0 %v139
  %v336 = vpop.f32.mrb[0].mxu0
  %v337 = vadd.f32 %v88, %v336
  %v338 = vpop.f32.mrb[0].mxu0
  %339 = vmatprep.mubr.f32.mxu0 0.0
  %340 = vmatmul.mubr.f32.gmra.mrb[0].mxu0 %v142
  %v341 = vpop.f32.mrb[0].mxu0
  %v342 = vadd.f32 %v88, %v341
  %v343 = vpop.f32.mrb[0].mxu0
  %344 = vmatprep.mubr.f32.mxu0 0.0
  %345 = vmatmul.mubr.f32.gmra.mrb[0].mxu0 %v145
  %v346 = vpop.f32.mrb[0].mxu0
  %v347 = vadd.f32 %v88, %v346
  %v348 = vpop.f32.mrb[0].mxu0
  %349 = vmatprep.mubr.f32.mxu0 0.0
  %350 = vmatmul.mubr.f32.gmra.mrb[0].mxu0 %v148
  %v351 = vpop.f32.mrb[0].mxu0
  %v352 = vadd.f32 %v88, %v351
  %v353 = vpop.f32.mrb[0].mxu0
  %354 = vmatprep.mubr.f32.mxu0 0.0
  %355 = vmatmul.mubr.f32.gmra.mrb[0].mxu0 %v151
  %v356 = vpop.f32.mrb[0].mxu0
  %v357 = vadd.f32 %v88, %v356
  %v358 = vpop.f32.mrb[0].mxu0
  %359 = vmatprep.mubr.f32.mxu0 0.0
  %360 = vmatmul.mubr.f32.gmra.mrb[0].mxu0 %v154
  %v361 = vpop.f32.mrb[0].mxu0
  %v362 = vadd.f32 %v88, %v361
  %v363 = vpop.f32.mrb[0].mxu0
  %364 = vmatprep.mubr.f32.mxu0 0.0
  %365 = vmatmul.mubr.f32.gmra.mrb[0].mxu0 %v157
  %v366 = vpop.f32.mrb[0].mxu0
  %v367 = vadd.f32 %v88, %v366
  %v368 = vpop.f32.mrb[0].mxu0
  %369 = vmatprep.mubr.f32.mxu0 0.0
  %370 = vmatmul.mubr.f32.gmra.mrb[0].mxu0 %v160
  %v371 = vpop.f32.mrb[0].mxu0
  %v372 = vadd.f32 %v88, %v371
  %v373 = vpop.f32.mrb[0].mxu0
  %374 = vmatprep.mubr.f32.mxu0 0.0
  %375 = vmatmul.mubr.f32.gmra.mrb[0].mxu0 %v163
  %v376 = vpop.f32.mrb[0].mxu0
  %v377 = vadd.f32 %v88, %v376
  %v378 = vpop.f32.mrb[0].mxu0
  %379 = vmatprep.mubr.f32.mxu0 0.0
  %380 = vmatmul.mubr.f32.gmra.mrb[0].mxu0 %v166
  %v381 = vpop.f32.mrb[0].mxu0
  %v382 = vadd.f32 %v88, %v381
  %v383 = vpop.f32.mrb[0].mxu0
  %384 = vmatprep.mubr.f32.mxu0 0.0
  %385 = vmatmul.mubr.f32.gmra.mrb[0].mxu0 %v169
  %v386 = vpop.f32.mrb[0].mxu0
  %v387 = vadd.f32 %v88, %v386
  %v388 = vpop.f32.mrb[0].mxu0
  %389 = vmatprep.mubr.f32.mxu0 0.0
  %390 = vmatmul.mubr.f32.gmra.mrb[0].mxu0 %v172
  %v391 = vpop.f32.mrb[0].mxu0
  %v392 = vadd.f32 %v88, %v391
  %v393 = vpop.f32.mrb[0].mxu0
  %394 = vmatprep.mubr.f32.mxu0 0.0
  %395 = vmatmul.mubr.f32.gmra.mrb[0].mxu0 %v175
  %v396 = vpop.f32.mrb[0].mxu0
  %v397 = vadd.f32 %v88, %v396
  %v398 = vpop.f32.mrb[0].mxu0
  %399 = vmatprep.mubr.f32.mxu0 0.0
  %400 = vmatmul.mubr.f32.gmra.mrb[0].mxu0 %v178
  %v401 = vpop.f32.mrb[0].mxu0
  %v402 = vadd.f32 %v88, %v401
  %v403 = vpop.f32.mrb[0].mxu0
  %404 = vmatprep.mubr.f32.mxu0 0.0
  %405 = vmatmul.mubr.f32.gmra.mrb[0].mxu0 %v181
  %v406 = vpop.f32.mrb[0].mxu0
  %v407 = vadd.f32 %v88, %v406
  %v408 = vpop.f32.mrb[0].mxu0
  %409 = vmatprep.mubr.f32.mxu0 0.0
  %410 = vmatmul.mubr.f32.gmra.mrb[0].mxu0 %v184
  %v411 = vpop.f32.mrb[0].mxu0
  %v412 = vadd.f32 %v88, %v411
  %v413 = vpop.f32.mrb[0].mxu0
  %414 = vdwg.mxu0
  %v415 = vmax.f32 %v257, 0.0
  %v416 = vmax.f32 %v262, 0.0
  %v417 = vmax.f32 %v267, 0.0
  %v418 = vmax.f32 %v272, 0.0
  %v419 = vmax.f32 %v277, 0.0
  %v420 = vmax.f32 %v282, 0.0
  %v421 = vmax.f32 %v287, 0.0
  %v422 = vmax.f32 %v292, 0.0
  %v423 = vmax.f32 %v297, 0.0
  %v424 = vmax.f32 %v302, 0.0
  %v425 = vmax.f32 %v307, 0.0
  %v426 = vmax.f32 %v312, 0.0
  %v427 = vmax.f32 %v317, 0.0
  %v428 = vmax.f32 %v322, 0.0
  %v429 = vmax.f32 %v327, 0.0
  %v430 = vmax.f32 %v332, 0.0
  %v431 = vmax.f32 %v337, 0.0
  %v432 = vmax.f32 %v342, 0.0
  %v433 = vmax.f32 %v347, 0.0
  %v434 = vmax.f32 %v352, 0.0
  %v435 = vmax.f32 %v357, 0.0
  %v436 = vmax.f32 %v362, 0.0
  %v437 = vmax.f32 %v367, 0.0
  %v438 = vmax.f32 %v372, 0.0
  %v439 = vmax.f32 %v377, 0.0
  %v440 = vmax.f32 %v382, 0.0
  %v441 = vmax.f32 %v387, 0.0
  %v442 = vmax.f32 %v392, 0.0
  %v443 = vmax.f32 %v397, 0.0
  %v444 = vmax.f32 %v402, 0.0
  %v445 = vmax.f32 %v407, 0.0
  %v446 = vmax.f32 %v412, 0.0
  %v447 = vld [vmem:[%s3] sm:$0xff]
  %v448 = vld [vmem:[%s3 + $0x8] sm:$0xff]
  %v449 = vld [vmem:[%s3 + $0x10] sm:$0x3]
  %s450 = sld [smem:[#allocation3]]
  %v451 = vstv %s450
  %vm452 = vcmask 146432
  %v454 = vsel %vm452, %v415, 0
  %v457 = vsel %vm452, %v416, 0
  %v460 = vsel %vm452, %v417, 0
  %v463 = vsel %vm452, %v418, 0
  %v466 = vsel %vm452, %v419, 0
  %v469 = vsel %vm452, %v420, 0
  %v472 = vsel %vm452, %v421, 0
  %v475 = vsel %vm452, %v422, 0
  %v478 = vsel %vm452, %v423, 0
  %v481 = vsel %vm452, %v424, 0
  %v484 = vsel %vm452, %v425, 0
  %v487 = vsel %vm452, %v426, 0
  %v490 = vsel %vm452, %v427, 0
  %v493 = vsel %vm452, %v428, 0
  %v496 = vsel %vm452, %v429, 0
  %v499 = vsel %vm452, %v430, 0
  %v502 = vsel %vm452, %v431, 0
  %v505 = vsel %vm452, %v432, 0
  %v508 = vsel %vm452, %v433, 0
  %v511 = vsel %vm452, %v434, 0
  %v514 = vsel %vm452, %v435, 0
  %v517 = vsel %vm452, %v436, 0
  %v520 = vsel %vm452, %v437, 0
  %v523 = vsel %vm452, %v438, 0
  %v526 = vsel %vm452, %v439, 0
  %v529 = vsel %vm452, %v440, 0
  %v532 = vsel %vm452, %v441, 0
  %v535 = vsel %vm452, %v442, 0
  %v538 = vsel %vm452, %v443, 0
  %v541 = vsel %vm452, %v444, 0
  %v544 = vsel %vm452, %v445, 0
  %v547 = vsel %vm452, %v446, 0
  %vm549 = vcmask 1041408
  %v551 = vsel %vm549, %v449, 0
  %553 = vmatprep.subr.mxu0 0.0
  %554 = vmatpush1.msra.mxu0 %v447
  %555 = vmatprep.subr.mxu0 0.0
  %556 = vmatpush1.msra.mxu0 %v448
  %557 = vmatprep.subr.mxu0 0.0
  %558 = vmatpush1.msra.mxu0 %v551
  %559 = vmatprep.subr.mxu0 0.0
  %560 = vmatpush1.msra.mxu0 0.0
  %561 = vmatprep.subr.mxu0 0.0
  %562 = vmatpush1.msra.mxu0 0.0
  %563 = vmatprep.subr.mxu0 0.0
  %564 = vmatpush1.msra.mxu0 0.0
  %565 = vmatprep.subr.mxu0 0.0
  %566 = vmatpush1.msra.mxu0 0.0
  %567 = vmatprep.subr.mxu0 0.0
  %568 = vmatpush1.msra.mxu0 0.0
  %569 = vmatprep.subr.mxu0 0.0
  %570 = vmatpush1.msra.mxu0 0.0
  %571 = vmatprep.subr.mxu0 0.0
  %572 = vmatpush1.msra.mxu0 0.0
  %573 = vmatprep.subr.mxu0 0.0
  %574 = vmatpush1.msra.mxu0 0.0
  %575 = vmatprep.subr.mxu0 0.0
  %576 = vmatpush1.msra.mxu0 0.0
  %577 = vmatprep.subr.mxu0 0.0
  %578 = vmatpush1.msra.mxu0 0.0
  %579 = vmatprep.subr.mxu0 0.0
  %580 = vmatpush1.msra.mxu0 0.0
  %581 = vmatprep.subr.mxu0 0.0
  %582 = vmatpush1.msra.mxu0 0.0
  %583 = vmatprep.subr.mxu0 0.0
  %584 = vmatpush1.msra.mxu0 0.0
  %585 = vmatprep.subr.mxu0 0.0
  %586 = vmatpush1.msra.mxu0 0.0
  %587 = vmatprep.subr.mxu0 0.0
  %588 = vmatpush1.msra.mxu0 0.0
  %589 = vmatprep.subr.mxu0 0.0
  %590 = vmatpush1.msra.mxu0 0.0
  %591 = vmatprep.subr.mxu0 0.0
  %592 = vmatpush1.msra.mxu0 0.0
  %593 = vmatprep.subr.mxu0 0.0
  %594 = vmatpush1.msra.mxu0 0.0
  %595 = vmatprep.subr.mxu0 0.0
  %596 = vmatpush1.msra.mxu0 0.0
  %597 = vmatprep.subr.mxu0 0.0
  %598 = vmatpush1.msra.mxu0 0.0
  %599 = vmatprep.subr.mxu0 0.0
  %600 = vmatpush1.msra.mxu0 0.0
  %601 = vmatprep.subr.mxu0 0.0
  %602 = vmatpush1.msra.mxu0 0.0
  %603 = vmatprep.subr.mxu0 0.0
  %604 = vmatpush1.msra.mxu0 0.0
  %605 = vmatprep.subr.mxu0 0.0
  %606 = vmatpush1.msra.mxu0 0.0
  %607 = vmatprep.subr.mxu0 0.0
  %608 = vmatpush1.msra.mxu0 0.0
  %609 = vmatprep.subr.mxu0 0.0
  %610 = vmatpush1.msra.mxu0 0.0
  %611 = vmatprep.subr.mxu0 0.0
  %612 = vmatpush1.msra.mxu0 0.0
  %613 = vmatprep.subr.mxu0 0.0
  %614 = vmatpush1.msra.mxu0 0.0
  %615 = vmatprep.subr.mxu0 0.0
  %616 = vmatpush1.msra.mxu0 0.0
  %617 = vmatprep.mubr.f32.mxu0 0.0
  %618 = vmatmul.mubr.f32.gmra.mrb[0].mxu0 %v454
  %v619 = vpop.f32.mrb[0].mxu0
  %v620 = vadd.f32 %v451, %v619
  %v621 = vpop.f32.mrb[0].mxu0
  %622 = vmatprep.mubr.f32.mxu0 0.0
  %623 = vmatmul.mubr.f32.gmra.mrb[0].mxu0 %v457
  %v624 = vpop.f32.mrb[0].mxu0
  %v625 = vadd.f32 %v451, %v624
  %v626 = vpop.f32.mrb[0].mxu0
  %627 = vmatprep.mubr.f32.mxu0 0.0
  %628 = vmatmul.mubr.f32.gmra.mrb[0].mxu0 %v460
  %v629 = vpop.f32.mrb[0].mxu0
  %v630 = vadd.f32 %v451, %v629
  %v631 = vpop.f32.mrb[0].mxu0
  %632 = vmatprep.mubr.f32.mxu0 0.0
  %633 = vmatmul.mubr.f32.gmra.mrb[0].mxu0 %v463
  %v634 = vpop.f32.mrb[0].mxu0
  %v635 = vadd.f32 %v451, %v634
  %v636 = vpop.f32.mrb[0].mxu0
  %637 = vmatprep.mubr.f32.mxu0 0.0
  %638 = vmatmul.mubr.f32.gmra.mrb[0].mxu0 %v466
  %v639 = vpop.f32.mrb[0].mxu0
  %v640 = vadd.f32 %v451, %v639
  %v641 = vpop.f32.mrb[0].mxu0
  %642 = vmatprep.mubr.f32.mxu0 0.0
  %643 = vmatmul.mubr.f32.gmra.mrb[0].mxu0 %v469
  %v644 = vpop.f32.mrb[0].mxu0
  %v645 = vadd.f32 %v451, %v644
  %v646 = vpop.f32.mrb[0].mxu0
  %647 = vmatprep.mubr.f32.mxu0 0.0
  %648 = vmatmul.mubr.f32.gmra.mrb[0].mxu0 %v472
  %v649 = vpop.f32.mrb[0].mxu0
  %v650 = vadd.f32 %v451, %v649
  %v651 = vpop.f32.mrb[0].mxu0
  %652 = vmatprep.mubr.f32.mxu0 0.0
  %653 = vmatmul.mubr.f32.gmra.mrb[0].mxu0 %v475
  %v654 = vpop.f32.mrb[0].mxu0
  %v655 = vadd.f32 %v451, %v654
  %v656 = vpop.f32.mrb[0].mxu0
  %657 = vmatprep.mubr.f32.mxu0 0.0
  %658 = vmatmul.mubr.f32.gmra.mrb[0].mxu0 %v478
  %v659 = vpop.f32.mrb[0].mxu0
  %v660 = vadd.f32 %v451, %v659
  %v661 = vpop.f32.mrb[0].mxu0
  %662 = vmatprep.mubr.f32.mxu0 0.0
  %663 = vmatmul.mubr.f32.gmra.mrb[0].mxu0 %v481
  %v664 = vpop.f32.mrb[0].mxu0
  %v665 = vadd.f32 %v451, %v664
  %v666 = vpop.f32.mrb[0].mxu0
  %667 = vmatprep.mubr.f32.mxu0 0.0
  %668 = vmatmul.mubr.f32.gmra.mrb[0].mxu0 %v484
  %v669 = vpop.f32.mrb[0].mxu0
  %v670 = vadd.f32 %v451, %v669
  %v671 = vpop.f32.mrb[0].mxu0
  %672 = vmatprep.mubr.f32.mxu0 0.0
  %673 = vmatmul.mubr.f32.gmra.mrb[0].mxu0 %v487
  %v674 = vpop.f32.mrb[0].mxu0
  %v675 = vadd.f32 %v451, %v674
  %v676 = vpop.f32.mrb[0].mxu0
  %677 = vmatprep.mubr.f32.mxu0 0.0
  %678 = vmatmul.mubr.f32.gmra.mrb[0].mxu0 %v490
  %v679 = vpop.f32.mrb[0].mxu0
  %v680 = vadd.f32 %v451, %v679
  %v681 = vpop.f32.mrb[0].mxu0
  %682 = vmatprep.mubr.f32.mxu0 0.0
  %683 = vmatmul.mubr.f32.gmra.mrb[0].mxu0 %v493
  %v684 = vpop.f32.mrb[0].mxu0
  %v685 = vadd.f32 %v451, %v684
  %v686 = vpop.f32.mrb[0].mxu0
  %687 = vmatprep.mubr.f32.mxu0 0.0
  %688 = vmatmul.mubr.f32.gmra.mrb[0].mxu0 %v496
  %v689 = vpop.f32.mrb[0].mxu0
  %v690 = vadd.f32 %v451, %v689
  %v691 = vpop.f32.mrb[0].mxu0
  %692 = vmatprep.mubr.f32.mxu0 0.0
  %693 = vmatmul.mubr.f32.gmra.mrb[0].mxu0 %v499
  %v694 = vpop.f32.mrb[0].mxu0
  %v695 = vadd.f32 %v451, %v694
  %v696 = vpop.f32.mrb[0].mxu0
  %697 = vmatprep.mubr.f32.mxu0 0.0
  %698 = vmatmul.mubr.f32.gmra.mrb[0].mxu0 %v502
  %v699 = vpop.f32.mrb[0].mxu0
  %v700 = vadd.f32 %v451, %v699
  %v701 = vpop.f32.mrb[0].mxu0
  %702 = vmatprep.mubr.f32.mxu0 0.0
  %703 = vmatmul.mubr.f32.gmra.mrb[0].mxu0 %v505
  %v704 = vpop.f32.mrb[0].mxu0
  %v705 = vadd.f32 %v451, %v704
  %v706 = vpop.f32.mrb[0].mxu0
  %707 = vmatprep.mubr.f32.mxu0 0.0
  %708 = vmatmul.mubr.f32.gmra.mrb[0].mxu0 %v508
  %v709 = vpop.f32.mrb[0].mxu0
  %v710 = vadd.f32 %v451, %v709
  %v711 = vpop.f32.mrb[0].mxu0
  %712 = vmatprep.mubr.f32.mxu0 0.0
  %713 = vmatmul.mubr.f32.gmra.mrb[0].mxu0 %v511
  %v714 = vpop.f32.mrb[0].mxu0
  %v715 = vadd.f32 %v451, %v714
  %v716 = vpop.f32.mrb[0].mxu0
  %717 = vmatprep.mubr.f32.mxu0 0.0
  %718 = vmatmul.mubr.f32.gmra.mrb[0].mxu0 %v514
  %v719 = vpop.f32.mrb[0].mxu0
  %v720 = vadd.f32 %v451, %v719
  %v721 = vpop.f32.mrb[0].mxu0
  %722 = vmatprep.mubr.f32.mxu0 0.0
  %723 = vmatmul.mubr.f32.gmra.mrb[0].mxu0 %v517
  %v724 = vpop.f32.mrb[0].mxu0
  %v725 = vadd.f32 %v451, %v724
  %v726 = vpop.f32.mrb[0].mxu0
  %727 = vmatprep.mubr.f32.mxu0 0.0
  %728 = vmatmul.mubr.f32.gmra.mrb[0].mxu0 %v520
  %v729 = vpop.f32.mrb[0].mxu0
  %v730 = vadd.f32 %v451, %v729
  %v731 = vpop.f32.mrb[0].mxu0
  %732 = vmatprep.mubr.f32.mxu0 0.0
  %733 = vmatmul.mubr.f32.gmra.mrb[0].mxu0 %v523
  %v734 = vpop.f32.mrb[0].mxu0
  %v735 = vadd.f32 %v451, %v734
  %v736 = vpop.f32.mrb[0].mxu0
  %737 = vmatprep.mubr.f32.mxu0 0.0
  %738 = vmatmul.mubr.f32.gmra.mrb[0].mxu0 %v526
  %v739 = vpop.f32.mrb[0].mxu0
  %v740 = vadd.f32 %v451, %v739
  %v741 = vpop.f32.mrb[0].mxu0
  %742 = vmatprep.mubr.f32.mxu0 0.0
  %743 = vmatmul.mubr.f32.gmra.mrb[0].mxu0 %v529
  %v744 = vpop.f32.mrb[0].mxu0
  %v745 = vadd.f32 %v451, %v744
  %v746 = vpop.f32.mrb[0].mxu0
  %747 = vmatprep.mubr.f32.mxu0 0.0
  %748 = vmatmul.mubr.f32.gmra.mrb[0].mxu0 %v532
  %v749 = vpop.f32.mrb[0].mxu0
  %v750 = vadd.f32 %v451, %v749
  %v751 = vpop.f32.mrb[0].mxu0
  %752 = vmatprep.mubr.f32.mxu0 0.0
  %753 = vmatmul.mubr.f32.gmra.mrb[0].mxu0 %v535
  %v754 = vpop.f32.mrb[0].mxu0
  %v755 = vadd.f32 %v451, %v754
  %v756 = vpop.f32.mrb[0].mxu0
  %757 = vmatprep.mubr.f32.mxu0 0.0
  %758 = vmatmul.mubr.f32.gmra.mrb[0].mxu0 %v538
  %v759 = vpop.f32.mrb[0].mxu0
  %v760 = vadd.f32 %v451, %v759
  %v761 = vpop.f32.mrb[0].mxu0
  %762 = vmatprep.mubr.f32.mxu0 0.0
  %763 = vmatmul.mubr.f32.gmra.mrb[0].mxu0 %v541
  %v764 = vpop.f32.mrb[0].mxu0
  %v765 = vadd.f32 %v451, %v764
  %v766 = vpop.f32.mrb[0].mxu0
  %767 = vmatprep.mubr.f32.mxu0 0.0
  %768 = vmatmul.mubr.f32.gmra.mrb[0].mxu0 %v544
  %v769 = vpop.f32.mrb[0].mxu0
  %v770 = vadd.f32 %v451, %v769
  %v771 = vpop.f32.mrb[0].mxu0
  %772 = vmatprep.mubr.f32.mxu0 0.0
  %773 = vmatmul.mubr.f32.gmra.mrb[0].mxu0 %v547
  %v774 = vpop.f32.mrb[0].mxu0
  %v775 = vadd.f32 %v451, %v774
  %v776 = vpop.f32.mrb[0].mxu0
  %777 = vdwg.mxu0
  %v778 = vmax.f32 %v620, 0.0
  %v779 = vmax.f32 %v625, 0.0
  %v780 = vmax.f32 %v630, 0.0
  %v781 = vmax.f32 %v635, 0.0
  %v782 = vmax.f32 %v640, 0.0
  %v783 = vmax.f32 %v645, 0.0
  %v784 = vmax.f32 %v650, 0.0
  %v785 = vmax.f32 %v655, 0.0
  %v786 = vmax.f32 %v660, 0.0
  %v787 = vmax.f32 %v665, 0.0
  %v788 = vmax.f32 %v670, 0.0
  %v789 = vmax.f32 %v675, 0.0
  %v790 = vmax.f32 %v680, 0.0
  %v791 = vmax.f32 %v685, 0.0
  %v792 = vmax.f32 %v690, 0.0
  %v793 = vmax.f32 %v695, 0.0
  %v794 = vmax.f32 %v700, 0.0
  %v795 = vmax.f32 %v705, 0.0
  %v796 = vmax.f32 %v710, 0.0
  %v797 = vmax.f32 %v715, 0.0
  %v798 = vmax.f32 %v720, 0.0
  %v799 = vmax.f32 %v725, 0.0
  %v800 = vmax.f32 %v730, 0.0
  %v801 = vmax.f32 %v735, 0.0
  %v802 = vmax.f32 %v740, 0.0
  %v803 = vmax.f32 %v745, 0.0
  %v804 = vmax.f32 %v750, 0.0
  %v805 = vmax.f32 %v755, 0.0
  %v806 = vmax.f32 %v760, 0.0
  %v807 = vmax.f32 %v765, 0.0
  %v808 = vmax.f32 %v770, 0.0
  %v809 = vmax.f32 %v775, 0.0
  %v810 = vld [vmem:[%s5] sm:$0xff]
  %v811 = vld [vmem:[%s5 + $0x8] sm:$0xff]
  %v812 = vld [vmem:[%s6] sm:$0x1]
  %v814 = vlaneseq
  %v815 = vshrl.u32 %v814, 7
  %v816 = vsub.s32 0, %v815
  %v817 = vrot.slane %v812, %v816
  %vm819 = vcmask 130048
  %v821 = vsel %vm819, %v778, 0
  %v824 = vsel %vm819, %v779, 0
  %v827 = vsel %vm819, %v780, 0
  %v830 = vsel %vm819, %v781, 0
  %v833 = vsel %vm819, %v782, 0
  %v836 = vsel %vm819, %v783, 0
  %v839 = vsel %vm819, %v784, 0
  %v842 = vsel %vm819, %v785, 0
  %v845 = vsel %vm819, %v786, 0
  %v848 = vsel %vm819, %v787, 0
  %v851 = vsel %vm819, %v788, 0
  %v854 = vsel %vm819, %v789, 0
  %v857 = vsel %vm819, %v790, 0
  %v860 = vsel %vm819, %v791, 0
  %v863 = vsel %vm819, %v792, 0
  %v866 = vsel %vm819, %v793, 0
  %v869 = vsel %vm819, %v794, 0
  %v872 = vsel %vm819, %v795, 0
  %v875 = vsel %vm819, %v796, 0
  %v878 = vsel %vm819, %v797, 0
  %v881 = vsel %vm819, %v798, 0
  %v884 = vsel %vm819, %v799, 0
  %v887 = vsel %vm819, %v800, 0
  %v890 = vsel %vm819, %v801, 0
  %v893 = vsel %vm819, %v802, 0
  %v896 = vsel %vm819, %v803, 0
  %v899 = vsel %vm819, %v804, 0
  %v902 = vsel %vm819, %v805, 0
  %v905 = vsel %vm819, %v806, 0
  %v908 = vsel %vm819, %v807, 0
  %v911 = vsel %vm819, %v808, 0
  %v914 = vsel %vm819, %v809, 0
  %916 = vmatprep.subr.mxu0 0.0
  %917 = vmatpush1.msra.mxu0 %v810
  %918 = vmatprep.subr.mxu0 0.0
  %919 = vmatpush1.msra.mxu0 %v811
  %920 = vmatprep.subr.mxu0 0.0
  %921 = vmatpush1.msra.mxu0 0.0
  %922 = vmatprep.subr.mxu0 0.0
  %923 = vmatpush1.msra.mxu0 0.0
  %924 = vmatprep.subr.mxu0 0.0
  %925 = vmatpush1.msra.mxu0 0.0
  %926 = vmatprep.subr.mxu0 0.0
  %927 = vmatpush1.msra.mxu0 0.0
  %928 = vmatprep.subr.mxu0 0.0
  %929 = vmatpush1.msra.mxu0 0.0
  %930 = vmatprep.subr.mxu0 0.0
  %931 = vmatpush1.msra.mxu0 0.0
  %932 = vmatprep.subr.mxu0 0.0
  %933 = vmatpush1.msra.mxu0 0.0
  %934 = vmatprep.subr.mxu0 0.0
  %935 = vmatpush1.msra.mxu0 0.0
  %936 = vmatprep.subr.mxu0 0.0
  %937 = vmatpush1.msra.mxu0 0.0
  %938 = vmatprep.subr.mxu0 0.0
  %939 = vmatpush1.msra.mxu0 0.0
  %940 = vmatprep.subr.mxu0 0.0
  %941 = vmatpush1.msra.mxu0 0.0
  %942 = vmatprep.subr.mxu0 0.0
  %943 = vmatpush1.msra.mxu0 0.0
  %944 = vmatprep.subr.mxu0 0.0
  %945 = vmatpush1.msra.mxu0 0.0
  %946 = vmatprep.subr.mxu0 0.0
  %947 = vmatpush1.msra.mxu0 0.0
  %948 = vmatprep.subr.mxu0 0.0
  %949 = vmatpush1.msra.mxu0 0.0
  %950 = vmatprep.subr.mxu0 0.0
  %951 = vmatpush1.msra.mxu0 0.0
  %952 = vmatprep.subr.mxu0 0.0
  %953 = vmatpush1.msra.mxu0 0.0
  %954 = vmatprep.subr.mxu0 0.0
  %955 = vmatpush1.msra.mxu0 0.0
  %956 = vmatprep.subr.mxu0 0.0
  %957 = vmatpush1.msra.mxu0 0.0
  %958 = vmatprep.subr.mxu0 0.0
  %959 = vmatpush1.msra.mxu0 0.0
  %960 = vmatprep.subr.mxu0 0.0
  %961 = vmatpush1.msra.mxu0 0.0
  %962 = vmatprep.subr.mxu0 0.0
  %963 = vmatpush1.msra.mxu0 0.0
  %964 = vmatprep.subr.mxu0 0.0
  %965 = vmatpush1.msra.mxu0 0.0
  %966 = vmatprep.subr.mxu0 0.0
  %967 = vmatpush1.msra.mxu0 0.0
  %968 = vmatprep.subr.mxu0 0.0
  %969 = vmatpush1.msra.mxu0 0.0
  %970 = vmatprep.subr.mxu0 0.0
  %971 = vmatpush1.msra.mxu0 0.0
  %972 = vmatprep.subr.mxu0 0.0
  %973 = vmatpush1.msra.mxu0 0.0
  %974 = vmatprep.subr.mxu0 0.0
  %975 = vmatpush1.msra.mxu0 0.0
  %976 = vmatprep.subr.mxu0 0.0
  %977 = vmatpush1.msra.mxu0 0.0
  %978 = vmatprep.subr.mxu0 0.0
  %979 = vmatpush1.msra.mxu0 0.0
  %980 = vmatprep.mubr.f32.mxu0 0.0
  %981 = vmatmul.mubr.f32.gmra.mrb[0].mxu0 %v821
  %v982 = vpop.f32.mrb[0].mxu0
  %v983 = vadd.f32 %v817, %v982
  %v984 = vpop.f32.mrb[0].mxu0
  %985 = vmatprep.mubr.f32.mxu0 0.0
  %986 = vmatmul.mubr.f32.gmra.mrb[0].mxu0 %v824
  %v987 = vpop.f32.mrb[0].mxu0
  %v988 = vadd.f32 %v817, %v987
  %v989 = vpop.f32.mrb[0].mxu0
  %990 = vmatprep.mubr.f32.mxu0 0.0
  %991 = vmatmul.mubr.f32.gmra.mrb[0].mxu0 %v827
  %v992 = vpop.f32.mrb[0].mxu0
  %v993 = vadd.f32 %v817, %v992
  %v994 = vpop.f32.mrb[0].mxu0
  %995 = vmatprep.mubr.f32.mxu0 0.0
  %996 = vmatmul.mubr.f32.gmra.mrb[0].mxu0 %v830
  %v997 = vpop.f32.mrb[0].mxu0
  %v998 = vadd.f32 %v817, %v997
  %v999 = vpop.f32.mrb[0].mxu0
  %1000 = vmatprep.mubr.f32.mxu0 0.0
  %1001 = vmatmul.mubr.f32.gmra.mrb[0].mxu0 %v833
  %v1002 = vpop.f32.mrb[0].mxu0
  %v1003 = vadd.f32 %v817, %v1002
  %v1004 = vpop.f32.mrb[0].mxu0
  %1005 = vmatprep.mubr.f32.mxu0 0.0
  %1006 = vmatmul.mubr.f32.gmra.mrb[0].mxu0 %v836
  %v1007 = vpop.f32.mrb[0].mxu0
  %v1008 = vadd.f32 %v817, %v1007
  %v1009 = vpop.f32.mrb[0].mxu0
  %1010 = vmatprep.mubr.f32.mxu0 0.0
  %1011 = vmatmul.mubr.f32.gmra.mrb[0].mxu0 %v839
  %v1012 = vpop.f32.mrb[0].mxu0
  %v1013 = vadd.f32 %v817, %v1012
  %v1014 = vpop.f32.mrb[0].mxu0
  %1015 = vmatprep.mubr.f32.mxu0 0.0
  %1016 = vmatmul.mubr.f32.gmra.mrb[0].mxu0 %v842
  %v1017 = vpop.f32.mrb[0].mxu0
  %v1018 = vadd.f32 %v817, %v1017
  %v1019 = vpop.f32.mrb[0].mxu0
  %1020 = vmatprep.mubr.f32.mxu0 0.0
  %1021 = vmatmul.mubr.f32.gmra.mrb[0].mxu0 %v845
  %v1022 = vpop.f32.mrb[0].mxu0
  %v1023 = vadd.f32 %v817, %v1022
  %v1024 = vpop.f32.mrb[0].mxu0
  %1025 = vmatprep.mubr.f32.mxu0 0.0
  %1026 = vmatmul.mubr.f32.gmra.mrb[0].mxu0 %v848
  %v1027 = vpop.f32.mrb[0].mxu0
  %v1028 = vadd.f32 %v817, %v1027
  %v1029 = vpop.f32.mrb[0].mxu0
  %1030 = vmatprep.mubr.f32.mxu0 0.0
  %1031 = vmatmul.mubr.f32.gmra.mrb[0].mxu0 %v851
  %v1032 = vpop.f32.mrb[0].mxu0
  %v1033 = vadd.f32 %v817, %v1032
  %v1034 = vpop.f32.mrb[0].mxu0
  %1035 = vmatprep.mubr.f32.mxu0 0.0
  %1036 = vmatmul.mubr.f32.gmra.mrb[0].mxu0 %v854
  %v1037 = vpop.f32.mrb[0].mxu0
  %v1038 = vadd.f32 %v817, %v1037
  %v1039 = vpop.f32.mrb[0].mxu0
  %1040 = vmatprep.mubr.f32.mxu0 0.0
  %1041 = vmatmul.mubr.f32.gmra.mrb[0].mxu0 %v857
  %v1042 = vpop.f32.mrb[0].mxu0
  %v1043 = vadd.f32 %v817, %v1042
  %v1044 = vpop.f32.mrb[0].mxu0
  %1045 = vmatprep.mubr.f32.mxu0 0.0
  %1046 = vmatmul.mubr.f32.gmra.mrb[0].mxu0 %v860
  %v1047 = vpop.f32.mrb[0].mxu0
  %v1048 = vadd.f32 %v817, %v1047
  %v1049 = vpop.f32.mrb[0].mxu0
  %1050 = vmatprep.mubr.f32.mxu0 0.0
  %1051 = vmatmul.mubr.f32.gmra.mrb[0].mxu0 %v863
  %v1052 = vpop.f32.mrb[0].mxu0
  %v1053 = vadd.f32 %v817, %v1052
  %v1054 = vpop.f32.mrb[0].mxu0
  %1055 = vmatprep.mubr.f32.mxu0 0.0
  %1056 = vmatmul.mubr.f32.gmra.mrb[0].mxu0 %v866
  %v1057 = vpop.f32.mrb[0].mxu0
  %v1058 = vadd.f32 %v817, %v1057
  %v1059 = vpop.f32.mrb[0].mxu0
  %1060 = vmatprep.mubr.f32.mxu0 0.0
  %1061 = vmatmul.mubr.f32.gmra.mrb[0].mxu0 %v869
  %v1062 = vpop.f32.mrb[0].mxu0
  %v1063 = vadd.f32 %v817, %v1062
  %v1064 = vpop.f32.mrb[0].mxu0
  %1065 = vmatprep.mubr.f32.mxu0 0.0
  %1066 = vmatmul.mubr.f32.gmra.mrb[0].mxu0 %v872
  %v1067 = vpop.f32.mrb[0].mxu0
  %v1068 = vadd.f32 %v817, %v1067
  %v1069 = vpop.f32.mrb[0].mxu0
  %1070 = vmatprep.mubr.f32.mxu0 0.0
  %1071 = vmatmul.mubr.f32.gmra.mrb[0].mxu0 %v875
  %v1072 = vpop.f32.mrb[0].mxu0
  %v1073 = vadd.f32 %v817, %v1072
  %v1074 = vpop.f32.mrb[0].mxu0
  %1075 = vmatprep.mubr.f32.mxu0 0.0
  %1076 = vmatmul.mubr.f32.gmra.mrb[0].mxu0 %v878
  %v1077 = vpop.f32.mrb[0].mxu0
  %v1078 = vadd.f32 %v817, %v1077
  %v1079 = vpop.f32.mrb[0].mxu0
  %1080 = vmatprep.mubr.f32.mxu0 0.0
  %1081 = vmatmul.mubr.f32.gmra.mrb[0].mxu0 %v881
  %v1082 = vpop.f32.mrb[0].mxu0
  %v1083 = vadd.f32 %v817, %v1082
  %v1084 = vpop.f32.mrb[0].mxu0
  %1085 = vmatprep.mubr.f32.mxu0 0.0
  %1086 = vmatmul.mubr.f32.gmra.mrb[0].mxu0 %v884
  %v1087 = vpop.f32.mrb[0].mxu0
  %v1088 = vadd.f32 %v817, %v1087
  %v1089 = vpop.f32.mrb[0].mxu0
  %1090 = vmatprep.mubr.f32.mxu0 0.0
  %1091 = vmatmul.mubr.f32.gmra.mrb[0].mxu0 %v887
  %v1092 = vpop.f32.mrb[0].mxu0
  %v1093 = vadd.f32 %v817, %v1092
  %v1094 = vpop.f32.mrb[0].mxu0
  %1095 = vmatprep.mubr.f32.mxu0 0.0
  %1096 = vmatmul.mubr.f32.gmra.mrb[0].mxu0 %v890
  %v1097 = vpop.f32.mrb[0].mxu0
  %v1098 = vadd.f32 %v817, %v1097
  %v1099 = vpop.f32.mrb[0].mxu0
  %1100 = vmatprep.mubr.f32.mxu0 0.0
  %1101 = vmatmul.mubr.f32.gmra.mrb[0].mxu0 %v893
  %v1102 = vpop.f32.mrb[0].mxu0
  %v1103 = vadd.f32 %v817, %v1102
  %v1104 = vpop.f32.mrb[0].mxu0
  %1105 = vmatprep.mubr.f32.mxu0 0.0
  %1106 = vmatmul.mubr.f32.gmra.mrb[0].mxu0 %v896
  %v1107 = vpop.f32.mrb[0].mxu0
  %v1108 = vadd.f32 %v817, %v1107
  %v1109 = vpop.f32.mrb[0].mxu0
  %1110 = vmatprep.mubr.f32.mxu0 0.0
  %1111 = vmatmul.mubr.f32.gmra.mrb[0].mxu0 %v899
  %v1112 = vpop.f32.mrb[0].mxu0
  %v1113 = vadd.f32 %v817, %v1112
  %v1114 = vpop.f32.mrb[0].mxu0
  %1115 = vmatprep.mubr.f32.mxu0 0.0
  %1116 = vmatmul.mubr.f32.gmra.mrb[0].mxu0 %v902
  %v1117 = vpop.f32.mrb[0].mxu0
  %v1118 = vadd.f32 %v817, %v1117
  %v1119 = vpop.f32.mrb[0].mxu0
  %1120 = vmatprep.mubr.f32.mxu0 0.0
  %1121 = vmatmul.mubr.f32.gmra.mrb[0].mxu0 %v905
  %v1122 = vpop.f32.mrb[0].mxu0
  %v1123 = vadd.f32 %v817, %v1122
  %v1124 = vpop.f32.mrb[0].mxu0
  %1125 = vmatprep.mubr.f32.mxu0 0.0
  %1126 = vmatmul.mubr.f32.gmra.mrb[0].mxu0 %v908
  %v1127 = vpop.f32.mrb[0].mxu0
  %v1128 = vadd.f32 %v817, %v1127
  %v1129 = vpop.f32.mrb[0].mxu0
  %1130 = vmatprep.mubr.f32.mxu0 0.0
  %1131 = vmatmul.mubr.f32.gmra.mrb[0].mxu0 %v911
  %v1132 = vpop.f32.mrb[0].mxu0
  %v1133 = vadd.f32 %v817, %v1132
  %v1134 = vpop.f32.mrb[0].mxu0
  %1135 = vmatprep.mubr.f32.mxu0 0.0
  %1136 = vmatmul.mubr.f32.gmra.mrb[0].mxu0 %v914
  %v1137 = vpop.f32.mrb[0].mxu0
  %v1138 = vadd.f32 %v817, %v1137
  %v1139 = vpop.f32.mrb[0].mxu0
  %1140 = vdwg.mxu0
  %vm1141 = vcmask 261120
  %v1142 = vsel %vm1141, %v983, 0.0
  %v1143 = vsel %vm1141, %v988, 0.0
  %v1144 = vadd.f32 %v1142, %v1143
  %v1145 = vsel %vm1141, %v993, 0.0
  %v1146 = vadd.f32 %v1144, %v1145
  %v1147 = vsel %vm1141, %v998, 0.0
  %v1148 = vadd.f32 %v1146, %v1147
  %v1149 = vsel %vm1141, %v1003, 0.0
  %v1150 = vadd.f32 %v1148, %v1149
  %v1151 = vsel %vm1141, %v1008, 0.0
  %v1152 = vadd.f32 %v1150, %v1151
  %v1153 = vsel %vm1141, %v1013, 0.0
  %v1154 = vadd.f32 %v1152, %v1153
  %v1155 = vsel %vm1141, %v1018, 0.0
  %v1156 = vadd.f32 %v1154, %v1155
  %v1157 = vsel %vm1141, %v1023, 0.0
  %v1158 = vadd.f32 %v1156, %v1157
  %v1159 = vsel %vm1141, %v1028, 0.0
  %v1160 = vadd.f32 %v1158, %v1159
  %v1161 = vsel %vm1141, %v1033, 0.0
  %v1162 = vadd.f32 %v1160, %v1161
  %v1163 = vsel %vm1141, %v1038, 0.0
  %v1164 = vadd.f32 %v1162, %v1163
  %v1165 = vsel %vm1141, %v1043, 0.0
  %v1166 = vadd.f32 %v1164, %v1165
  %v1167 = vsel %vm1141, %v1048, 0.0
  %v1168 = vadd.f32 %v1166, %v1167
  %v1169 = vsel %vm1141, %v1053, 0.0
  %v1170 = vadd.f32 %v1168, %v1169
  %v1171 = vsel %vm1141, %v1058, 0.0
  %v1172 = vadd.f32 %v1170, %v1171
  %v1173 = vsel %vm1141, %v1063, 0.0
  %v1174 = vadd.f32 %v1172, %v1173
  %v1175 = vsel %vm1141, %v1068, 0.0
  %v1176 = vadd.f32 %v1174, %v1175
  %v1177 = vsel %vm1141, %v1073, 0.0
  %v1178 = vadd.f32 %v1176, %v1177
  %v1179 = vsel %vm1141, %v1078, 0.0
  %v1180 = vadd.f32 %v1178, %v1179
  %v1181 = vsel %vm1141, %v1083, 0.0
  %v1182 = vadd.f32 %v1180, %v1181
  %v1183 = vsel %vm1141, %v1088, 0.0
  %v1184 = vadd.f32 %v1182, %v1183
  %v1185 = vsel %vm1141, %v1093, 0.0
  %v1186 = vadd.f32 %v1184, %v1185
  %v1187 = vsel %vm1141, %v1098, 0.0
  %v1188 = vadd.f32 %v1186, %v1187
  %v1189 = vsel %vm1141, %v1103, 0.0
  %v1190 = vadd.f32 %v1188, %v1189
  %v1191 = vsel %vm1141, %v1108, 0.0
  %v1192 = vadd.f32 %v1190, %v1191
  %v1193 = vsel %vm1141, %v1113, 0.0
  %v1194 = vadd.f32 %v1192, %v1193
  %v1195 = vsel %vm1141, %v1118, 0.0
  %v1196 = vadd.f32 %v1194, %v1195
  %v1197 = vsel %vm1141, %v1123, 0.0
  %v1198 = vadd.f32 %v1196, %v1197
  %v1199 = vsel %vm1141, %v1128, 0.0
  %v1200 = vadd.f32 %v1198, %v1199
  %v1201 = vsel %vm1141, %v1133, 0.0
  %v1202 = vadd.f32 %v1200, %v1201
  %v1203 = vsel %vm1141, %v1138, 0.0
  %v1204 = vadd.f32 %v1202, %v1203
  %v1205 = vrot.slane %v1204, 4
  %v1206 = vadd.f32 %v1204, %v1205
  %v1207 = vrot.slane %v1206, 2
  %v1208 = vadd.f32 %v1206, %v1207
  %v1209 = vrot.slane %v1208, 1
  %v1210 = vadd.f32 %v1208, %v1209
  %v1211 = vrcp.pop 256.0
  %v1212 = vmul.f32 %v1210, %v1211
  %v1213 = vsub.f32 %v983, %v1212
  %v1214 = vsub.f32 %v988, %v1212
  %v1215 = vsub.f32 %v993, %v1212
  %v1216 = vsub.f32 %v998, %v1212
  %v1217 = vsub.f32 %v1003, %v1212
  %v1218 = vsub.f32 %v1008, %v1212
  %v1219 = vsub.f32 %v1013, %v1212
  %v1220 = vsub.f32 %v1018, %v1212
  %v1221 = vsub.f32 %v1023, %v1212
  %v1222 = vsub.f32 %v1028, %v1212
  %v1223 = vsub.f32 %v1033, %v1212
  %v1224 = vsub.f32 %v1038, %v1212
  %v1225 = vsub.f32 %v1043, %v1212
  %v1226 = vsub.f32 %v1048, %v1212
  %v1227 = vsub.f32 %v1053, %v1212
  %v1228 = vsub.f32 %v1058, %v1212
  %v1229 = vsub.f32 %v1063, %v1212
  %v1230 = vsub.f32 %v1068, %v1212
  %v1231 = vsub.f32 %v1073, %v1212
  %v1232 = vsub.f32 %v1078, %v1212
  %v1233 = vsub.f32 %v1083, %v1212
  %v1234 = vsub.f32 %v1088, %v1212
  %v1235 = vsub.f32 %v1093, %v1212
  %v1236 = vsub.f32 %v1098, %v1212
  %v1237 = vsub.f32 %v1103, %v1212
  %v1238 = vsub.f32 %v1108, %v1212
  %v1239 = vsub.f32 %v1113, %v1212
  %v1240 = vsub.f32 %v1118, %v1212
  %v1241 = vsub.f32 %v1123, %v1212
  %v1242 = vsub.f32 %v1128, %v1212
  %v1243 = vsub.f32 %v1133, %v1212
  %v1244 = vsub.f32 %v1138, %v1212
  %v1245 = vmul.f32 %v1213, %v1213
  %v1246 = vmul.f32 %v1214, %v1214
  %v1247 = vmul.f32 %v1215, %v1215
  %v1248 = vmul.f32 %v1216, %v1216
  %v1249 = vmul.f32 %v1217, %v1217
  %v1250 = vmul.f32 %v1218, %v1218
  %v1251 = vmul.f32 %v1219, %v1219
  %v1252 = vmul.f32 %v1220, %v1220
  %v1253 = vmul.f32 %v1221, %v1221
  %v1254 = vmul.f32 %v1222, %v1222
  %v1255 = vmul.f32 %v1223, %v1223
  %v1256 = vmul.f32 %v1224, %v1224
  %v1257 = vmul.f32 %v1225, %v1225
  %v1258 = vmul.f32 %v1226, %v1226
  %v1259 = vmul.f32 %v1227, %v1227
  %v1260 = vmul.f32 %v1228, %v1228
  %v1261 = vmul.f32 %v1229, %v1229
  %v1262 = vmul.f32 %v1230, %v1230
  %v1263 = vmul.f32 %v1231, %v1231
  %v1264 = vmul.f32 %v1232, %v1232
  %v1265 = vmul.f32 %v1233, %v1233
  %v1266 = vmul.f32 %v1234, %v1234
  %v1267 = vmul.f32 %v1235, %v1235
  %v1268 = vmul.f32 %v1236, %v1236
  %v1269 = vmul.f32 %v1237, %v1237
  %v1270 = vmul.f32 %v1238, %v1238
  %v1271 = vmul.f32 %v1239, %v1239
  %v1272 = vmul.f32 %v1240, %v1240
  %v1273 = vmul.f32 %v1241, %v1241
  %v1274 = vmul.f32 %v1242, %v1242
  %v1275 = vmul.f32 %v1243, %v1243
  %v1276 = vmul.f32 %v1244, %v1244
  %v1277 = vsel %vm1141, %v1245, 0.0
  %v1278 = vsel %vm1141, %v1246, 0.0
  %v1279 = vadd.f32 %v1277, %v1278
  %v1280 = vsel %vm1141, %v1247, 0.0
  %v1281 = vadd.f32 %v1279, %v1280
  %v1282 = vsel %vm1141, %v1248, 0.0
  %v1283 = vadd.f32 %v1281, %v1282
  %v1284 = vsel %vm1141, %v1249, 0.0
  %v1285 = vadd.f32 %v1283, %v1284
  %v1286 = vsel %vm1141, %v1250, 0.0
  %v1287 = vadd.f32 %v1285, %v1286
  %v1288 = vsel %vm1141, %v1251, 0.0
  %v1289 = vadd.f32 %v1287, %v1288
  %v1290 = vsel %vm1141, %v1252, 0.0
  %v1291 = vadd.f32 %v1289, %v1290
  %v1292 = vsel %vm1141, %v1253, 0.0
  %v1293 = vadd.f32 %v1291, %v1292
  %v1294 = vsel %vm1141, %v1254, 0.0
  %v1295 = vadd.f32 %v1293, %v1294
  %v1296 = vsel %vm1141, %v1255, 0.0
  %v1297 = vadd.f32 %v1295, %v1296
  %v1298 = vsel %vm1141, %v1256, 0.0
  %v1299 = vadd.f32 %v1297, %v1298
  %v1300 = vsel %vm1141, %v1257, 0.0
  %v1301 = vadd.f32 %v1299, %v1300
  %v1302 = vsel %vm1141, %v1258, 0.0
  %v1303 = vadd.f32 %v1301, %v1302
  %v1304 = vsel %vm1141, %v1259, 0.0
  %v1305 = vadd.f32 %v1303, %v1304
  %v1306 = vsel %vm1141, %v1260, 0.0
  %v1307 = vadd.f32 %v1305, %v1306
  %v1308 = vsel %vm1141, %v1261, 0.0
  %v1309 = vadd.f32 %v1307, %v1308
  %v1310 = vsel %vm1141, %v1262, 0.0
  %v1311 = vadd.f32 %v1309, %v1310
  %v1312 = vsel %vm1141, %v1263, 0.0
  %v1313 = vadd.f32 %v1311, %v1312
  %v1314 = vsel %vm1141, %v1264, 0.0
  %v1315 = vadd.f32 %v1313, %v1314
  %v1316 = vsel %vm1141, %v1265, 0.0
  %v1317 = vadd.f32 %v1315, %v1316
  %v1318 = vsel %vm1141, %v1266, 0.0
  %v1319 = vadd.f32 %v1317, %v1318
  %v1320 = vsel %vm1141, %v1267, 0.0
  %v1321 = vadd.f32 %v1319, %v1320
  %v1322 = vsel %vm1141, %v1268, 0.0
  %v1323 = vadd.f32 %v1321, %v1322
  %v1324 = vsel %vm1141, %v1269, 0.0
  %v1325 = vadd.f32 %v1323, %v1324
  %v1326 = vsel %vm1141, %v1270, 0.0
  %v1327 = vadd.f32 %v1325, %v1326
  %v1328 = vsel %vm1141, %v1271, 0.0
  %v1329 = vadd.f32 %v1327, %v1328
  %v1330 = vsel %vm1141, %v1272, 0.0
  %v1331 = vadd.f32 %v1329, %v1330
  %v1332 = vsel %vm1141, %v1273, 0.0
  %v1333 = vadd.f32 %v1331, %v1332
  %v1334 = vsel %vm1141, %v1274, 0.0
  %v1335 = vadd.f32 %v1333, %v1334
  %v1336 = vsel %vm1141, %v1275, 0.0
  %v1337 = vadd.f32 %v1335, %v1336
  %v1338 = vsel %vm1141, %v1276, 0.0
  %v1339 = vadd.f32 %v1337, %v1338
  %v1340 = vrot.slane %v1339, 4
  %v1341 = vadd.f32 %v1339, %v1340
  %v1342 = vrot.slane %v1341, 2
  %v1343 = vadd.f32 %v1341, %v1342
  %v1344 = vrot.slane %v1343, 1
  %v1345 = vadd.f32 %v1343, %v1344
  %v1346 = vmul.f32 %v1345, %v1211
  %v1347 = vld [vmem:[%s7] sm:$0x1]
  %v1348 = vadd.f32 %v1346, 1e-05
  %v1349 = vrsqrt.pop %v1348
  %v1350 = vmul.f32 %v1347, %v1349
  %v1352 = vlaneseq
  %v1353 = vshrl.u32 %v1352, 7
  %v1354 = vsub.s32 0, %v1353
  %v1355 = vrot.slane %v1350, %v1354
  %v1357 = vmul.f32 %v1213, %v1355
  %v1358 = vmul.f32 %v1214, %v1355
  %v1359 = vmul.f32 %v1215, %v1355
  %v1360 = vmul.f32 %v1216, %v1355
  %v1361 = vmul.f32 %v1217, %v1355
  %v1362 = vmul.f32 %v1218, %v1355
  %v1363 = vmul.f32 %v1219, %v1355
  %v1364 = vmul.f32 %v1220, %v1355
  %v1365 = vmul.f32 %v1221, %v1355
  %v1366 = vmul.f32 %v1222, %v1355
  %v1367 = vmul.f32 %v1223, %v1355
  %v1368 = vmul.f32 %v1224, %v1355
  %v1369 = vmul.f32 %v1225, %v1355
  %v1370 = vmul.f32 %v1226, %v1355
  %v1371 = vmul.f32 %v1227, %v1355
  %v1372 = vmul.f32 %v1228, %v1355
  %v1373 = vmul.f32 %v1229, %v1355
  %v1374 = vmul.f32 %v1230, %v1355
  %v1375 = vmul.f32 %v1231, %v1355
  %v1376 = vmul.f32 %v1232, %v1355
  %v1377 = vmul.f32 %v1233, %v1355
  %v1378 = vmul.f32 %v1234, %v1355
  %v1379 = vmul.f32 %v1235, %v1355
  %v1380 = vmul.f32 %v1236, %v1355
  %v1381 = vmul.f32 %v1237, %v1355
  %v1382 = vmul.f32 %v1238, %v1355
  %v1383 = vmul.f32 %v1239, %v1355
  %v1384 = vmul.f32 %v1240, %v1355
  %v1385 = vmul.f32 %v1241, %v1355
  %v1386 = vmul.f32 %v1242, %v1355
  %v1387 = vmul.f32 %v1243, %v1355
  %v1388 = vmul.f32 %v1244, %v1355
  %v1389 = vld [vmem:[%s8] sm:$0x1]
  %v1391 = vlaneseq
  %v1392 = vshrl.u32 %v1391, 7
  %v1393 = vsub.s32 0, %v1392
  %v1394 = vrot.slane %v1389, %v1393
  %v1396 = vadd.f32 %v1357, %v1394
  %v1397 = vadd.f32 %v1358, %v1394
  %v1398 = vadd.f32 %v1359, %v1394
  %v1399 = vadd.f32 %v1360, %v1394
  %v1400 = vadd.f32 %v1361, %v1394
  %v1401 = vadd.f32 %v1362, %v1394
  %v1402 = vadd.f32 %v1363, %v1394
  %v1403 = vadd.f32 %v1364, %v1394
  %v1404 = vadd.f32 %v1365, %v1394
  %v1405 = vadd.f32 %v1366, %v1394
  %v1406 = vadd.f32 %v1367, %v1394
  %v1407 = vadd.f32 %v1368, %v1394
  %v1408 = vadd.f32 %v1369, %v1394
  %v1409 = vadd.f32 %v1370, %v1394
  %v1410 = vadd.f32 %v1371, %v1394
  %v1411 = vadd.f32 %v1372, %v1394
  %v1412 = vadd.f32 %v1373, %v1394
  %v1413 = vadd.f32 %v1374, %v1394
  %v1414 = vadd.f32 %v1375, %v1394
  %v1415 = vadd.f32 %v1376, %v1394
  %v1416 = vadd.f32 %v1377, %v1394
  %v1417 = vadd.f32 %v1378, %v1394
  %v1418 = vadd.f32 %v1379, %v1394
  %v1419 = vadd.f32 %v1380, %v1394
  %v1420 = vadd.f32 %v1381, %v1394
  %v1421 = vadd.f32 %v1382, %v1394
  %v1422 = vadd.f32 %v1383, %v1394
  %v1423 = vadd.f32 %v1384, %v1394
  %v1424 = vadd.f32 %v1385, %v1394
  %v1425 = vadd.f32 %v1386, %v1394
  %v1426 = vadd.f32 %v1387, %v1394
  %v1427 = vadd.f32 %v1388, %v1394
  %v1428 = vmax.f32 %v1396, 0.0
  %v1429 = vmax.f32 %v1397, 0.0
  %v1430 = vmax.f32 %v1398, 0.0
  %v1431 = vmax.f32 %v1399, 0.0
  %v1432 = vmax.f32 %v1400, 0.0
  %v1433 = vmax.f32 %v1401, 0.0
  %v1434 = vmax.f32 %v1402, 0.0
  %v1435 = vmax.f32 %v1403, 0.0
  %v1436 = vmax.f32 %v1404, 0.0
  %v1437 = vmax.f32 %v1405, 0.0
  %v1438 = vmax.f32 %v1406, 0.0
  %v1439 = vmax.f32 %v1407, 0.0
  %v1440 = vmax.f32 %v1408, 0.0
  %v1441 = vmax.f32 %v1409, 0.0
  %v1442 = vmax.f32 %v1410, 0.0
  %v1443 = vmax.f32 %v1411, 0.0
  %v1444 = vmax.f32 %v1412, 0.0
  %v1445 = vmax.f32 %v1413, 0.0
  %v1446 = vmax.f32 %v1414, 0.0
  %v1447 = vmax.f32 %v1415, 0.0
  %v1448 = vmax.f32 %v1416, 0.0
  %v1449 = vmax.f32 %v1417, 0.0
  %v1450 = vmax.f32 %v1418, 0.0
  %v1451 = vmax.f32 %v1419, 0.0
  %v1452 = vmax.f32 %v1420, 0.0
  %v1453 = vmax.f32 %v1421, 0.0
  %v1454 = vmax.f32 %v1422, 0.0
  %v1455 = vmax.f32 %v1423, 0.0
  %v1456 = vmax.f32 %v1424, 0.0
  %v1457 = vmax.f32 %v1425, 0.0
  %v1458 = vmax.f32 %v1426, 0.0
  %v1459 = vmax.f32 %v1427, 0.0
  %v1460 = vld [vmem:[%s9] sm:$0xff]
  %v1461 = vld [vmem:[%s9 + $0x8] sm:$0xff]
  %v1462 = vld [vmem:[%s9 + $0x10] sm:$0xff]
  %v1463 = vld [vmem:[%s9 + $0x18] sm:$0xff]
  %v1464 = vld [vmem:[%s10] sm:$0x1]
  %v1466 = vlaneseq
  %v1467 = vshrl.u32 %v1466, 7
  %v1468 = vsub.s32 0, %v1467
  %v1469 = vrot.slane %v1464, %v1468
  %v1472 = vsel %vm1141, %v1428, 0
  %v1475 = vsel %vm1141, %v1429, 0
  %v1478 = vsel %vm1141, %v1430, 0
  %v1481 = vsel %vm1141, %v1431, 0
  %v1484 = vsel %vm1141, %v1432, 0
  %v1487 = vsel %vm1141, %v1433, 0
  %v1490 = vsel %vm1141, %v1434, 0
  %v1493 = vsel %vm1141, %v1435, 0
  %v1496 = vsel %vm1141, %v1436, 0
  %v1499 = vsel %vm1141, %v1437, 0
  %v1502 = vsel %vm1141, %v1438, 0
  %v1505 = vsel %vm1141, %v1439, 0
  %v1508 = vsel %vm1141, %v1440, 0
  %v1511 = vsel %vm1141, %v1441, 0
  %v1514 = vsel %vm1141, %v1442, 0
  %v1517 = vsel %vm1141, %v1443, 0
  %v1520 = vsel %vm1141, %v1444, 0
  %v1523 = vsel %vm1141, %v1445, 0
  %v1526 = vsel %vm1141, %v1446, 0
  %v1529 = vsel %vm1141, %v1447, 0
  %v1532 = vsel %vm1141, %v1448, 0
  %v1535 = vsel %vm1141, %v1449, 0
  %v1538 = vsel %vm1141, %v1450, 0
  %v1541 = vsel %vm1141, %v1451, 0
  %v1544 = vsel %vm1141, %v1452, 0
  %v1547 = vsel %vm1141, %v1453, 0
  %v1550 = vsel %vm1141, %v1454, 0
  %v1553 = vsel %vm1141, %v1455, 0
  %v1556 = vsel %vm1141, %v1456, 0
  %v1559 = vsel %vm1141, %v1457, 0
  %v1562 = vsel %vm1141, %v1458, 0
  %v1565 = vsel %vm1141, %v1459, 0
  %1567 = vmatprep.subr.mxu0 0.0
  %1568 = vmatpush1.msra.mxu0 %v1460
  %1569 = vmatprep.subr.mxu0 0.0
  %1570 = vmatpush1.msra.mxu0 %v1461
  %1571 = vmatprep.subr.mxu0 0.0
  %1572 = vmatpush1.msra.mxu0 %v1462
  %1573 = vmatprep.subr.mxu0 0.0
  %1574 = vmatpush1.msra.mxu0 %v1463
  %1575 = vmatprep.subr.mxu0 0.0
  %1576 = vmatpush1.msra.mxu0 0.0
  %1577 = vmatprep.subr.mxu0 0.0
  %1578 = vmatpush1.msra.mxu0 0.0
  %1579 = vmatprep.subr.mxu0 0.0
  %1580 = vmatpush1.msra.mxu0 0.0
  %1581 = vmatprep.subr.mxu0 0.0
  %1582 = vmatpush1.msra.mxu0 0.0
  %1583 = vmatprep.subr.mxu0 0.0
  %1584 = vmatpush1.msra.mxu0 0.0
  %1585 = vmatprep.subr.mxu0 0.0
  %1586 = vmatpush1.msra.mxu0 0.0
  %1587 = vmatprep.subr.mxu0 0.0
  %1588 = vmatpush1.msra.mxu0 0.0
  %1589 = vmatprep.subr.mxu0 0.0
  %1590 = vmatpush1.msra.mxu0 0.0
  %1591 = vmatprep.subr.mxu0 0.0
  %1592 = vmatpush1.msra.mxu0 0.0
  %1593 = vmatprep.subr.mxu0 0.0
  %1594 = vmatpush1.msra.mxu0 0.0
  %1595 = vmatprep.subr.mxu0 0.0
  %1596 = vmatpush1.msra.mxu0 0.0
  %1597 = vmatprep.subr.mxu0 0.0
  %1598 = vmatpush1.msra.mxu0 0.0
  %1599 = vmatprep.subr.mxu0 0.0
  %1600 = vmatpush1.msra.mxu0 0.0
  %1601 = vmatprep.subr.mxu0 0.0
  %1602 = vmatpush1.msra.mxu0 0.0
  %1603 = vmatprep.subr.mxu0 0.0
  %1604 = vmatpush1.msra.mxu0 0.0
  %1605 = vmatprep.subr.mxu0 0.0
  %1606 = vmatpush1.msra.mxu0 0.0
  %1607 = vmatprep.subr.mxu0 0.0
  %1608 = vmatpush1.msra.mxu0 0.0
  %1609 = vmatprep.subr.mxu0 0.0
  %1610 = vmatpush1.msra.mxu0 0.0
  %1611 = vmatprep.subr.mxu0 0.0
  %1612 = vmatpush1.msra.mxu0 0.0
  %1613 = vmatprep.subr.mxu0 0.0
  %1614 = vmatpush1.msra.mxu0 0.0
  %1615 = vmatprep.subr.mxu0 0.0
  %1616 = vmatpush1.msra.mxu0 0.0
  %1617 = vmatprep.subr.mxu0 0.0
  %1618 = vmatpush1.msra.mxu0 0.0
  %1619 = vmatprep.subr.mxu0 0.0
  %1620 = vmatpush1.msra.mxu0 0.0
  %1621 = vmatprep.subr.mxu0 0.0
  %1622 = vmatpush1.msra.mxu0 0.0
  %1623 = vmatprep.subr.mxu0 0.0
  %1624 = vmatpush1.msra.mxu0 0.0
  %1625 = vmatprep.subr.mxu0 0.0
  %1626 = vmatpush1.msra.mxu0 0.0
  %1627 = vmatprep.subr.mxu0 0.0
  %1628 = vmatpush1.msra.mxu0 0.0
  %1629 = vmatprep.subr.mxu0 0.0
  %1630 = vmatpush1.msra.mxu0 0.0
  %1631 = vmatprep.mubr.f32.mxu0 0.0
  %1632 = vmatmul.mubr.f32.gmra.mrb[0].mxu0 %v1472
  %v1633 = vpop.f32.mrb[0].mxu0
  %v1634 = vadd.f32 %v1469, %v1633
  %v1635 = vpop.f32.mrb[0].mxu0
  %1636 = vmatprep.mubr.f32.mxu0 0.0
  %1637 = vmatmul.mubr.f32.gmra.mrb[0].mxu0 %v1475
  %v1638 = vpop.f32.mrb[0].mxu0
  %v1639 = vadd.f32 %v1469, %v1638
  %v1640 = vpop.f32.mrb[0].mxu0
  %1641 = vmatprep.mubr.f32.mxu0 0.0
  %1642 = vmatmul.mubr.f32.gmra.mrb[0].mxu0 %v1478
  %v1643 = vpop.f32.mrb[0].mxu0
  %v1644 = vadd.f32 %v1469, %v1643
  %v1645 = vpop.f32.mrb[0].mxu0
  %1646 = vmatprep.mubr.f32.mxu0 0.0
  %1647 = vmatmul.mubr.f32.gmra.mrb[0].mxu0 %v1481
  %v1648 = vpop.f32.mrb[0].mxu0
  %v1649 = vadd.f32 %v1469, %v1648
  %v1650 = vpop.f32.mrb[0].mxu0
  %1651 = vmatprep.mubr.f32.mxu0 0.0
  %1652 = vmatmul.mubr.f32.gmra.mrb[0].mxu0 %v1484
  %v1653 = vpop.f32.mrb[0].mxu0
  %v1654 = vadd.f32 %v1469, %v1653
  %v1655 = vpop.f32.mrb[0].mxu0
  %1656 = vmatprep.mubr.f32.mxu0 0.0
  %1657 = vmatmul.mubr.f32.gmra.mrb[0].mxu0 %v1487
  %v1658 = vpop.f32.mrb[0].mxu0
  %v1659 = vadd.f32 %v1469, %v1658
  %v1660 = vpop.f32.mrb[0].mxu0
  %1661 = vmatprep.mubr.f32.mxu0 0.0
  %1662 = vmatmul.mubr.f32.gmra.mrb[0].mxu0 %v1490
  %v1663 = vpop.f32.mrb[0].mxu0
  %v1664 = vadd.f32 %v1469, %v1663
  %v1665 = vpop.f32.mrb[0].mxu0
  %1666 = vmatprep.mubr.f32.mxu0 0.0
  %1667 = vmatmul.mubr.f32.gmra.mrb[0].mxu0 %v1493
  %v1668 = vpop.f32.mrb[0].mxu0
  %v1669 = vadd.f32 %v1469, %v1668
  %v1670 = vpop.f32.mrb[0].mxu0
  %1671 = vmatprep.mubr.f32.mxu0 0.0
  %1672 = vmatmul.mubr.f32.gmra.mrb[0].mxu0 %v1496
  %v1673 = vpop.f32.mrb[0].mxu0
  %v1674 = vadd.f32 %v1469, %v1673
  %v1675 = vpop.f32.mrb[0].mxu0
  %1676 = vmatprep.mubr.f32.mxu0 0.0
  %1677 = vmatmul.mubr.f32.gmra.mrb[0].mxu0 %v1499
  %v1678 = vpop.f32.mrb[0].mxu0
  %v1679 = vadd.f32 %v1469, %v1678
  %v1680 = vpop.f32.mrb[0].mxu0
  %1681 = vmatprep.mubr.f32.mxu0 0.0
  %1682 = vmatmul.mubr.f32.gmra.mrb[0].mxu0 %v1502
  %v1683 = vpop.f32.mrb[0].mxu0
  %v1684 = vadd.f32 %v1469, %v1683
  %v1685 = vpop.f32.mrb[0].mxu0
  %1686 = vmatprep.mubr.f32.mxu0 0.0
  %1687 = vmatmul.mubr.f32.gmra.mrb[0].mxu0 %v1505
  %v1688 = vpop.f32.mrb[0].mxu0
  %v1689 = vadd.f32 %v1469, %v1688
  %v1690 = vpop.f32.mrb[0].mxu0
  %1691 = vmatprep.mubr.f32.mxu0 0.0
  %1692 = vmatmul.mubr.f32.gmra.mrb[0].mxu0 %v1508
  %v1693 = vpop.f32.mrb[0].mxu0
  %v1694 = vadd.f32 %v1469, %v1693
  %v1695 = vpop.f32.mrb[0].mxu0
  %1696 = vmatprep.mubr.f32.mxu0 0.0
  %1697 = vmatmul.mubr.f32.gmra.mrb[0].mxu0 %v1511
  %v1698 = vpop.f32.mrb[0].mxu0
  %v1699 = vadd.f32 %v1469, %v1698
  %v1700 = vpop.f32.mrb[0].mxu0
  %1701 = vmatprep.mubr.f32.mxu0 0.0
  %1702 = vmatmul.mubr.f32.gmra.mrb[0].mxu0 %v1514
  %v1703 = vpop.f32.mrb[0].mxu0
  %v1704 = vadd.f32 %v1469, %v1703
  %v1705 = vpop.f32.mrb[0].mxu0
  %1706 = vmatprep.mubr.f32.mxu0 0.0
  %1707 = vmatmul.mubr.f32.gmra.mrb[0].mxu0 %v1517
  %v1708 = vpop.f32.mrb[0].mxu0
  %v1709 = vadd.f32 %v1469, %v1708
  %v1710 = vpop.f32.mrb[0].mxu0
  %1711 = vmatprep.mubr.f32.mxu0 0.0
  %1712 = vmatmul.mubr.f32.gmra.mrb[0].mxu0 %v1520
  %v1713 = vpop.f32.mrb[0].mxu0
  %v1714 = vadd.f32 %v1469, %v1713
  %v1715 = vpop.f32.mrb[0].mxu0
  %1716 = vmatprep.mubr.f32.mxu0 0.0
  %1717 = vmatmul.mubr.f32.gmra.mrb[0].mxu0 %v1523
  %v1718 = vpop.f32.mrb[0].mxu0
  %v1719 = vadd.f32 %v1469, %v1718
  %v1720 = vpop.f32.mrb[0].mxu0
  %1721 = vmatprep.mubr.f32.mxu0 0.0
  %1722 = vmatmul.mubr.f32.gmra.mrb[0].mxu0 %v1526
  %v1723 = vpop.f32.mrb[0].mxu0
  %v1724 = vadd.f32 %v1469, %v1723
  %v1725 = vpop.f32.mrb[0].mxu0
  %1726 = vmatprep.mubr.f32.mxu0 0.0
  %1727 = vmatmul.mubr.f32.gmra.mrb[0].mxu0 %v1529
  %v1728 = vpop.f32.mrb[0].mxu0
  %v1729 = vadd.f32 %v1469, %v1728
  %v1730 = vpop.f32.mrb[0].mxu0
  %1731 = vmatprep.mubr.f32.mxu0 0.0
  %1732 = vmatmul.mubr.f32.gmra.mrb[0].mxu0 %v1532
  %v1733 = vpop.f32.mrb[0].mxu0
  %v1734 = vadd.f32 %v1469, %v1733
  %v1735 = vpop.f32.mrb[0].mxu0
  %1736 = vmatprep.mubr.f32.mxu0 0.0
  %1737 = vmatmul.mubr.f32.gmra.mrb[0].mxu0 %v1535
  %v1738 = vpop.f32.mrb[0].mxu0
  %v1739 = vadd.f32 %v1469, %v1738
  %v1740 = vpop.f32.mrb[0].mxu0
  %1741 = vmatprep.mubr.f32.mxu0 0.0
  %1742 = vmatmul.mubr.f32.gmra.mrb[0].mxu0 %v1538
  %v1743 = vpop.f32.mrb[0].mxu0
  %v1744 = vadd.f32 %v1469, %v1743
  %v1745 = vpop.f32.mrb[0].mxu0
  %1746 = vmatprep.mubr.f32.mxu0 0.0
  %1747 = vmatmul.mubr.f32.gmra.mrb[0].mxu0 %v1541
  %v1748 = vpop.f32.mrb[0].mxu0
  %v1749 = vadd.f32 %v1469, %v1748
  %v1750 = vpop.f32.mrb[0].mxu0
  %1751 = vmatprep.mubr.f32.mxu0 0.0
  %1752 = vmatmul.mubr.f32.gmra.mrb[0].mxu0 %v1544
  %v1753 = vpop.f32.mrb[0].mxu0
  %v1754 = vadd.f32 %v1469, %v1753
  %v1755 = vpop.f32.mrb[0].mxu0
  %1756 = vmatprep.mubr.f32.mxu0 0.0
  %1757 = vmatmul.mubr.f32.gmra.mrb[0].mxu0 %v1547
  %v1758 = vpop.f32.mrb[0].mxu0
  %v1759 = vadd.f32 %v1469, %v1758
  %v1760 = vpop.f32.mrb[0].mxu0
  %1761 = vmatprep.mubr.f32.mxu0 0.0
  %1762 = vmatmul.mubr.f32.gmra.mrb[0].mxu0 %v1550
  %v1763 = vpop.f32.mrb[0].mxu0
  %v1764 = vadd.f32 %v1469, %v1763
  %v1765 = vpop.f32.mrb[0].mxu0
  %1766 = vmatprep.mubr.f32.mxu0 0.0
  %1767 = vmatmul.mubr.f32.gmra.mrb[0].mxu0 %v1553
  %v1768 = vpop.f32.mrb[0].mxu0
  %v1769 = vadd.f32 %v1469, %v1768
  %v1770 = vpop.f32.mrb[0].mxu0
  %1771 = vmatprep.mubr.f32.mxu0 0.0
  %1772 = vmatmul.mubr.f32.gmra.mrb[0].mxu0 %v1556
  %v1773 = vpop.f32.mrb[0].mxu0
  %v1774 = vadd.f32 %v1469, %v1773
  %v1775 = vpop.f32.mrb[0].mxu0
  %1776 = vmatprep.mubr.f32.mxu0 0.0
  %1777 = vmatmul.mubr.f32.gmra.mrb[0].mxu0 %v1559
  %v1778 = vpop.f32.mrb[0].mxu0
  %v1779 = vadd.f32 %v1469, %v1778
  %v1780 = vpop.f32.mrb[0].mxu0
  %1781 = vmatprep.mubr.f32.mxu0 0.0
  %1782 = vmatmul.mubr.f32.gmra.mrb[0].mxu0 %v1562
  %v1783 = vpop.f32.mrb[0].mxu0
  %v1784 = vadd.f32 %v1469, %v1783
  %v1785 = vpop.f32.mrb[0].mxu0
  %1786 = vmatprep.mubr.f32.mxu0 0.0
  %1787 = vmatmul.mubr.f32.gmra.mrb[0].mxu0 %v1565
  %v1788 = vpop.f32.mrb[0].mxu0
  %v1789 = vadd.f32 %v1469, %v1788
  %v1790 = vpop.f32.mrb[0].mxu0
  %1791 = vdwg.mxu0
  %v1792 = vsel %vm1141, %v1634, 0.0
  %v1793 = vsel %vm1141, %v1639, 0.0
  %v1794 = vadd.f32 %v1792, %v1793
  %v1795 = vsel %vm1141, %v1644, 0.0
  %v1796 = vadd.f32 %v1794, %v1795
  %v1797 = vsel %vm1141, %v1649, 0.0
  %v1798 = vadd.f32 %v1796, %v1797
  %v1799 = vsel %vm1141, %v1654, 0.0
  %v1800 = vadd.f32 %v1798, %v1799
  %v1801 = vsel %vm1141, %v1659, 0.0
  %v1802 = vadd.f32 %v1800, %v1801
  %v1803 = vsel %vm1141, %v1664, 0.0
  %v1804 = vadd.f32 %v1802, %v1803
  %v1805 = vsel %vm1141, %v1669, 0.0
  %v1806 = vadd.f32 %v1804, %v1805
  %v1807 = vsel %vm1141, %v1674, 0.0
  %v1808 = vadd.f32 %v1806, %v1807
  %v1809 = vsel %vm1141, %v1679, 0.0
  %v1810 = vadd.f32 %v1808, %v1809
  %v1811 = vsel %vm1141, %v1684, 0.0
  %v1812 = vadd.f32 %v1810, %v1811
  %v1813 = vsel %vm1141, %v1689, 0.0
  %v1814 = vadd.f32 %v1812, %v1813
  %v1815 = vsel %vm1141, %v1694, 0.0
  %v1816 = vadd.f32 %v1814, %v1815
  %v1817 = vsel %vm1141, %v1699, 0.0
  %v1818 = vadd.f32 %v1816, %v1817
  %v1819 = vsel %vm1141, %v1704, 0.0
  %v1820 = vadd.f32 %v1818, %v1819
  %v1821 = vsel %vm1141, %v1709, 0.0
  %v1822 = vadd.f32 %v1820, %v1821
  %v1823 = vsel %vm1141, %v1714, 0.0
  %v1824 = vadd.f32 %v1822, %v1823
  %v1825 = vsel %vm1141, %v1719, 0.0
  %v1826 = vadd.f32 %v1824, %v1825
  %v1827 = vsel %vm1141, %v1724, 0.0
  %v1828 = vadd.f32 %v1826, %v1827
  %v1829 = vsel %vm1141, %v1729, 0.0
  %v1830 = vadd.f32 %v1828, %v1829
  %v1831 = vsel %vm1141, %v1734, 0.0
  %v1832 = vadd.f32 %v1830, %v1831
  %v1833 = vsel %vm1141, %v1739, 0.0
  %v1834 = vadd.f32 %v1832, %v1833
  %v1835 = vsel %vm1141, %v1744, 0.0
  %v1836 = vadd.f32 %v1834, %v1835
  %v1837 = vsel %vm1141, %v1749, 0.0
  %v1838 = vadd.f32 %v1836, %v1837
  %v1839 = vsel %vm1141, %v1754, 0.0
  %v1840 = vadd.f32 %v1838, %v1839
  %v1841 = vsel %vm1141, %v1759, 0.0
  %v1842 = vadd.f32 %v1840, %v1841
  %v1843 = vsel %vm1141, %v1764, 0.0
  %v1844 = vadd.f32 %v1842, %v1843
  %v1845 = vsel %vm1141, %v1769, 0.0
  %v1846 = vadd.f32 %v1844, %v1845
  %v1847 = vsel %vm1141, %v1774, 0.0
  %v1848 = vadd.f32 %v1846, %v1847
  %v1849 = vsel %vm1141, %v1779, 0.0
  %v1850 = vadd.f32 %v1848, %v1849
  %v1851 = vsel %vm1141, %v1784, 0.0
  %v1852 = vadd.f32 %v1850, %v1851
  %v1853 = vsel %vm1141, %v1789, 0.0
  %v1854 = vadd.f32 %v1852, %v1853
  %v1855 = vrot.slane %v1854, 4
  %v1856 = vadd.f32 %v1854, %v1855
  %v1857 = vrot.slane %v1856, 2
  %v1858 = vadd.f32 %v1856, %v1857
  %v1859 = vrot.slane %v1858, 1
  %v1860 = vadd.f32 %v1858, %v1859
  %v1861 = vmul.f32 %v1860, %v1211
  %v1862 = vsub.f32 %v1634, %v1861
  %v1863 = vsub.f32 %v1639, %v1861
  %v1864 = vsub.f32 %v1644, %v1861
  %v1865 = vsub.f32 %v1649, %v1861
  %v1866 = vsub.f32 %v1654, %v1861
  %v1867 = vsub.f32 %v1659, %v1861
  %v1868 = vsub.f32 %v1664, %v1861
  %v1869 = vsub.f32 %v1669, %v1861
  %v1870 = vsub.f32 %v1674, %v1861
  %v1871 = vsub.f32 %v1679, %v1861
  %v1872 = vsub.f32 %v1684, %v1861
  %v1873 = vsub.f32 %v1689, %v1861
  %v1874 = vsub.f32 %v1694, %v1861
  %v1875 = vsub.f32 %v1699, %v1861
  %v1876 = vsub.f32 %v1704, %v1861
  %v1877 = vsub.f32 %v1709, %v1861
  %v1878 = vsub.f32 %v1714, %v1861
  %v1879 = vsub.f32 %v1719, %v1861
  %v1880 = vsub.f32 %v1724, %v1861
  %v1881 = vsub.f32 %v1729, %v1861
  %v1882 = vsub.f32 %v1734, %v1861
  %v1883 = vsub.f32 %v1739, %v1861
  %v1884 = vsub.f32 %v1744, %v1861
  %v1885 = vsub.f32 %v1749, %v1861
  %v1886 = vsub.f32 %v1754, %v1861
  %v1887 = vsub.f32 %v1759, %v1861
  %v1888 = vsub.f32 %v1764, %v1861
  %v1889 = vsub.f32 %v1769, %v1861
  %v1890 = vsub.f32 %v1774, %v1861
  %v1891 = vsub.f32 %v1779, %v1861
  %v1892 = vsub.f32 %v1784, %v1861
  %v1893 = vsub.f32 %v1789, %v1861
  %v1894 = vmul.f32 %v1862, %v1862
  %v1895 = vmul.f32 %v1863, %v1863
  %v1896 = vmul.f32 %v1864, %v1864
  %v1897 = vmul.f32 %v1865, %v1865
  %v1898 = vmul.f32 %v1866, %v1866
  %v1899 = vmul.f32 %v1867, %v1867
  %v1900 = vmul.f32 %v1868, %v1868
  %v1901 = vmul.f32 %v1869, %v1869
  %v1902 = vmul.f32 %v1870, %v1870
  %v1903 = vmul.f32 %v1871, %v1871
  %v1904 = vmul.f32 %v1872, %v1872
  %v1905 = vmul.f32 %v1873, %v1873
  %v1906 = vmul.f32 %v1874, %v1874
  %v1907 = vmul.f32 %v1875, %v1875
  %v1908 = vmul.f32 %v1876, %v1876
  %v1909 = vmul.f32 %v1877, %v1877
  %v1910 = vmul.f32 %v1878, %v1878
  %v1911 = vmul.f32 %v1879, %v1879
  %v1912 = vmul.f32 %v1880, %v1880
  %v1913 = vmul.f32 %v1881, %v1881
  %v1914 = vmul.f32 %v1882, %v1882
  %v1915 = vmul.f32 %v1883, %v1883
  %v1916 = vmul.f32 %v1884, %v1884
  %v1917 = vmul.f32 %v1885, %v1885
  %v1918 = vmul.f32 %v1886, %v1886
  %v1919 = vmul.f32 %v1887, %v1887
  %v1920 = vmul.f32 %v1888, %v1888
  %v1921 = vmul.f32 %v1889, %v1889
  %v1922 = vmul.f32 %v1890, %v1890
  %v1923 = vmul.f32 %v1891, %v1891
  %v1924 = vmul.f32 %v1892, %v1892
  %v1925 = vmul.f32 %v1893, %v1893
  %v1926 = vsel %vm1141, %v1894, 0.0
  %v1927 = vsel %vm1141, %v1895, 0.0
  %v1928 = vadd.f32 %v1926, %v1927
  %v1929 = vsel %vm1141, %v1896, 0.0
  %v1930 = vadd.f32 %v1928, %v1929
  %v1931 = vsel %vm1141, %v1897, 0.0
  %v1932 = vadd.f32 %v1930, %v1931
  %v1933 = vsel %vm1141, %v1898, 0.0
  %v1934 = vadd.f32 %v1932, %v1933
  %v1935 = vsel %vm1141, %v1899, 0.0
  %v1936 = vadd.f32 %v1934, %v1935
  %v1937 = vsel %vm1141, %v1900, 0.0
  %v1938 = vadd.f32 %v1936, %v1937
  %v1939 = vsel %vm1141, %v1901, 0.0
  %v1940 = vadd.f32 %v1938, %v1939
  %v1941 = vsel %vm1141, %v1902, 0.0
  %v1942 = vadd.f32 %v1940, %v1941
  %v1943 = vsel %vm1141, %v1903, 0.0
  %v1944 = vadd.f32 %v1942, %v1943
  %v1945 = vsel %vm1141, %v1904, 0.0
  %v1946 = vadd.f32 %v1944, %v1945
  %v1947 = vsel %vm1141, %v1905, 0.0
  %v1948 = vadd.f32 %v1946, %v1947
  %v1949 = vsel %vm1141, %v1906, 0.0
  %v1950 = vadd.f32 %v1948, %v1949
  %v1951 = vsel %vm1141, %v1907, 0.0
  %v1952 = vadd.f32 %v1950, %v1951
  %v1953 = vsel %vm1141, %v1908, 0.0
  %v1954 = vadd.f32 %v1952, %v1953
  %v1955 = vsel %vm1141, %v1909, 0.0
  %v1956 = vadd.f32 %v1954, %v1955
  %v1957 = vsel %vm1141, %v1910, 0.0
  %v1958 = vadd.f32 %v1956, %v1957
  %v1959 = vsel %vm1141, %v1911, 0.0
  %v1960 = vadd.f32 %v1958, %v1959
  %v1961 = vsel %vm1141, %v1912, 0.0
  %v1962 = vadd.f32 %v1960, %v1961
  %v1963 = vsel %vm1141, %v1913, 0.0
  %v1964 = vadd.f32 %v1962, %v1963
  %v1965 = vsel %vm1141, %v1914, 0.0
  %v1966 = vadd.f32 %v1964, %v1965
  %v1967 = vsel %vm1141, %v1915, 0.0
  %v1968 = vadd.f32 %v1966, %v1967
  %v1969 = vsel %vm1141, %v1916, 0.0
  %v1970 = vadd.f32 %v1968, %v1969
  %v1971 = vsel %vm1141, %v1917, 0.0
  %v1972 = vadd.f32 %v1970, %v1971
  %v1973 = vsel %vm1141, %v1918, 0.0
  %v1974 = vadd.f32 %v1972, %v1973
  %v1975 = vsel %vm1141, %v1919, 0.0
  %v1976 = vadd.f32 %v1974, %v1975
  %v1977 = vsel %vm1141, %v1920, 0.0
  %v1978 = vadd.f32 %v1976, %v1977
  %v1979 = vsel %vm1141, %v1921, 0.0
  %v1980 = vadd.f32 %v1978, %v1979
  %v1981 = vsel %vm1141, %v1922, 0.0
  %v1982 = vadd.f32 %v1980, %v1981
  %v1983 = vsel %vm1141, %v1923, 0.0
  %v1984 = vadd.f32 %v1982, %v1983
  %v1985 = vsel %vm1141, %v1924, 0.0
  %v1986 = vadd.f32 %v1984, %v1985
  %v1987 = vsel %vm1141, %v1925, 0.0
  %v1988 = vadd.f32 %v1986, %v1987
  %v1989 = vrot.slane %v1988, 4
  %v1990 = vadd.f32 %v1988, %v1989
  %v1991 = vrot.slane %v1990, 2
  %v1992 = vadd.f32 %v1990, %v1991
  %v1993 = vrot.slane %v1992, 1
  %v1994 = vadd.f32 %v1992, %v1993
  %v1995 = vmul.f32 %v1994, %v1211
  %v1996 = vld [vmem:[%s11] sm:$0x1]
  %v1997 = vadd.f32 %v1995, 1e-05
  %v1998 = vrsqrt.pop %v1997
  %v1999 = vmul.f32 %v1996, %v1998
  %v2001 = vlaneseq
  %v2002 = vshrl.u32 %v2001, 7
  %v2003 = vsub.s32 0, %v2002
  %v2004 = vrot.slane %v1999, %v2003
  %v2006 = vmul.f32 %v1862, %v2004
  %v2007 = vmul.f32 %v1863, %v2004
  %v2008 = vmul.f32 %v1864, %v2004
  %v2009 = vmul.f32 %v1865, %v2004
  %v2010 = vmul.f32 %v1866, %v2004
  %v2011 = vmul.f32 %v1867, %v2004
  %v2012 = vmul.f32 %v1868, %v2004
  %v2013 = vmul.f32 %v1869, %v2004
  %v2014 = vmul.f32 %v1870, %v2004
  %v2015 = vmul.f32 %v1871, %v2004
  %v2016 = vmul.f32 %v1872, %v2004
  %v2017 = vmul.f32 %v1873, %v2004
  %v2018 = vmul.f32 %v1874, %v2004
  %v2019 = vmul.f32 %v1875, %v2004
  %v2020 = vmul.f32 %v1876, %v2004
  %v2021 = vmul.f32 %v1877, %v2004
  %v2022 = vmul.f32 %v1878, %v2004
  %v2023 = vmul.f32 %v1879, %v2004
  %v2024 = vmul.f32 %v1880, %v2004
  %v2025 = vmul.f32 %v1881, %v2004
  %v2026 = vmul.f32 %v1882, %v2004
  %v2027 = vmul.f32 %v1883, %v2004
  %v2028 = vmul.f32 %v1884, %v2004
  %v2029 = vmul.f32 %v1885, %v2004
  %v2030 = vmul.f32 %v1886, %v2004
  %v2031 = vmul.f32 %v1887, %v2004
  %v2032 = vmul.f32 %v1888, %v2004
  %v2033 = vmul.f32 %v1889, %v2004
  %v2034 = vmul.f32 %v1890, %v2004
  %v2035 = vmul.f32 %v1891, %v2004
  %v2036 = vmul.f32 %v1892, %v2004
  %v2037 = vmul.f32 %v1893, %v2004
  %v2038 = vld [vmem:[%s12] sm:$0x1]
  %v2040 = vlaneseq
  %v2041 = vshrl.u32 %v2040, 7
  %v2042 = vsub.s32 0, %v2041
  %v2043 = vrot.slane %v2038, %v2042
  %v2045 = vadd.f32 %v2006, %v2043
  %v2046 = vadd.f32 %v2007, %v2043
  %v2047 = vadd.f32 %v2008, %v2043
  %v2048 = vadd.f32 %v2009, %v2043
  %v2049 = vadd.f32 %v2010, %v2043
  %v2050 = vadd.f32 %v2011, %v2043
  %v2051 = vadd.f32 %v2012, %v2043
  %v2052 = vadd.f32 %v2013, %v2043
  %v2053 = vadd.f32 %v2014, %v2043
  %v2054 = vadd.f32 %v2015, %v2043
  %v2055 = vadd.f32 %v2016, %v2043
  %v2056 = vadd.f32 %v2017, %v2043
  %v2057 = vadd.f32 %v2018, %v2043
  %v2058 = vadd.f32 %v2019, %v2043
  %v2059 = vadd.f32 %v2020, %v2043
  %v2060 = vadd.f32 %v2021, %v2043
  %v2061 = vadd.f32 %v2022, %v2043
  %v2062 = vadd.f32 %v2023, %v2043
  %v2063 = vadd.f32 %v2024, %v2043
  %v2064 = vadd.f32 %v2025, %v2043
  %v2065 = vadd.f32 %v2026, %v2043
  %v2066 = vadd.f32 %v2027, %v2043
  %v2067 = vadd.f32 %v2028, %v2043
  %v2068 = vadd.f32 %v2029, %v2043
  %v2069 = vadd.f32 %v2030, %v2043
  %v2070 = vadd.f32 %v2031, %v2043
  %v2071 = vadd.f32 %v2032, %v2043
  %v2072 = vadd.f32 %v2033, %v2043
  %v2073 = vadd.f32 %v2034, %v2043
  %v2074 = vadd.f32 %v2035, %v2043
  %v2075 = vadd.f32 %v2036, %v2043
  %v2076 = vadd.f32 %v2037, %v2043
  %v2077 = vmax.f32 %v2045, 0.0
  %v2078 = vmax.f32 %v2046, 0.0
  %v2079 = vmax.f32 %v2047, 0.0
  %v2080 = vmax.f32 %v2048, 0.0
  %v2081 = vmax.f32 %v2049, 0.0
  %v2082 = vmax.f32 %v2050, 0.0
  %v2083 = vmax.f32 %v2051, 0.0
  %v2084 = vmax.f32 %v2052, 0.0
  %v2085 = vmax.f32 %v2053, 0.0
  %v2086 = vmax.f32 %v2054, 0.0
  %v2087 = vmax.f32 %v2055, 0.0
  %v2088 = vmax.f32 %v2056, 0.0
  %v2089 = vmax.f32 %v2057, 0.0
  %v2090 = vmax.f32 %v2058, 0.0
  %v2091 = vmax.f32 %v2059, 0.0
  %v2092 = vmax.f32 %v2060, 0.0
  %v2093 = vmax.f32 %v2061, 0.0
  %v2094 = vmax.f32 %v2062, 0.0
  %v2095 = vmax.f32 %v2063, 0.0
  %v2096 = vmax.f32 %v2064, 0.0
  %v2097 = vmax.f32 %v2065, 0.0
  %v2098 = vmax.f32 %v2066, 0.0
  %v2099 = vmax.f32 %v2067, 0.0
  %v2100 = vmax.f32 %v2068, 0.0
  %v2101 = vmax.f32 %v2069, 0.0
  %v2102 = vmax.f32 %v2070, 0.0
  %v2103 = vmax.f32 %v2071, 0.0
  %v2104 = vmax.f32 %v2072, 0.0
  %v2105 = vmax.f32 %v2073, 0.0
  %v2106 = vmax.f32 %v2074, 0.0
  %v2107 = vmax.f32 %v2075, 0.0
  %v2108 = vmax.f32 %v2076, 0.0
  %v2109 = vld [vmem:[%s13] sm:$0xff]
  %v2110 = vld [vmem:[%s13 + $0x8] sm:$0xff]
  %v2111 = vld [vmem:[%s13 + $0x10] sm:$0xff]
  %v2112 = vld [vmem:[%s13 + $0x18] sm:$0xff]
  %v2113 = vld [vmem:[%s14] sm:$0x1]
  %v2115 = vlaneseq
  %v2116 = vshrl.u32 %v2115, 7
  %v2117 = vsub.s32 0, %v2116
  %v2118 = vrot.slane %v2113, %v2117
  %v2121 = vsel %vm1141, %v2077, 0
  %v2124 = vsel %vm1141, %v2078, 0
  %v2127 = vsel %vm1141, %v2079, 0
  %v2130 = vsel %vm1141, %v2080, 0
  %v2133 = vsel %vm1141, %v2081, 0
  %v2136 = vsel %vm1141, %v2082, 0
  %v2139 = vsel %vm1141, %v2083, 0
  %v2142 = vsel %vm1141, %v2084, 0
  %v2145 = vsel %vm1141, %v2085, 0
  %v2148 = vsel %vm1141, %v2086, 0
  %v2151 = vsel %vm1141, %v2087, 0
  %v2154 = vsel %vm1141, %v2088, 0
  %v2157 = vsel %vm1141, %v2089, 0
  %v2160 = vsel %vm1141, %v2090, 0
  %v2163 = vsel %vm1141, %v2091, 0
  %v2166 = vsel %vm1141, %v2092, 0
  %v2169 = vsel %vm1141, %v2093, 0
  %v2172 = vsel %vm1141, %v2094, 0
  %v2175 = vsel %vm1141, %v2095, 0
  %v2178 = vsel %vm1141, %v2096, 0
  %v2181 = vsel %vm1141, %v2097, 0
  %v2184 = vsel %vm1141, %v2098, 0
  %v2187 = vsel %vm1141, %v2099, 0
  %v2190 = vsel %vm1141, %v2100, 0
  %v2193 = vsel %vm1141, %v2101, 0
  %v2196 = vsel %vm1141, %v2102, 0
  %v2199 = vsel %vm1141, %v2103, 0
  %v2202 = vsel %vm1141, %v2104, 0
  %v2205 = vsel %vm1141, %v2105, 0
  %v2208 = vsel %vm1141, %v2106, 0
  %v2211 = vsel %vm1141, %v2107, 0
  %v2214 = vsel %vm1141, %v2108, 0
  %2216 = vmatprep.subr.mxu0 0.0
  %2217 = vmatpush1.msra.mxu0 %v2109
  %2218 = vmatprep.subr.mxu0 0.0
  %2219 = vmatpush1.msra.mxu0 %v2110
  %2220 = vmatprep.subr.mxu0 0.0
  %2221 = vmatpush1.msra.mxu0 %v2111
  %2222 = vmatprep.subr.mxu0 0.0
  %2223 = vmatpush1.msra.mxu0 %v2112
  %2224 = vmatprep.subr.mxu0 0.0
  %2225 = vmatpush1.msra.mxu0 0.0
  %2226 = vmatprep.subr.mxu0 0.0
  %2227 = vmatpush1.msra.mxu0 0.0
  %2228 = vmatprep.subr.mxu0 0.0
  %2229 = vmatpush1.msra.mxu0 0.0
  %2230 = vmatprep.subr.mxu0 0.0
  %2231 = vmatpush1.msra.mxu0 0.0
  %2232 = vmatprep.subr.mxu0 0.0
  %2233 = vmatpush1.msra.mxu0 0.0
  %2234 = vmatprep.subr.mxu0 0.0
  %2235 = vmatpush1.msra.mxu0 0.0
  %2236 = vmatprep.subr.mxu0 0.0
  %2237 = vmatpush1.msra.mxu0 0.0
  %2238 = vmatprep.subr.mxu0 0.0
  %2239 = vmatpush1.msra.mxu0 0.0
  %2240 = vmatprep.subr.mxu0 0.0
  %2241 = vmatpush1.msra.mxu0 0.0
  %2242 = vmatprep.subr.mxu0 0.0
  %2243 = vmatpush1.msra.mxu0 0.0
  %2244 = vmatprep.subr.mxu0 0.0
  %2245 = vmatpush1.msra.mxu0 0.0
  %2246 = vmatprep.subr.mxu0 0.0
  %2247 = vmatpush1.msra.mxu0 0.0
  %2248 = vmatprep.subr.mxu0 0.0
  %2249 = vmatpush1.msra.mxu0 0.0
  %2250 = vmatprep.subr.mxu0 0.0
  %2251 = vmatpush1.msra.mxu0 0.0
  %2252 = vmatprep.subr.mxu0 0.0
  %2253 = vmatpush1.msra.mxu0 0.0
  %2254 = vmatprep.subr.mxu0 0.0
  %2255 = vmatpush1.msra.mxu0 0.0
  %2256 = vmatprep.subr.mxu0 0.0
  %2257 = vmatpush1.msra.mxu0 0.0
  %2258 = vmatprep.subr.mxu0 0.0
  %2259 = vmatpush1.msra.mxu0 0.0
  %2260 = vmatprep.subr.mxu0 0.0
  %2261 = vmatpush1.msra.mxu0 0.0
  %2262 = vmatprep.subr.mxu0 0.0
  %2263 = vmatpush1.msra.mxu0 0.0
  %2264 = vmatprep.subr.mxu0 0.0
  %2265 = vmatpush1.msra.mxu0 0.0
  %2266 = vmatprep.subr.mxu0 0.0
  %2267 = vmatpush1.msra.mxu0 0.0
  %2268 = vmatprep.subr.mxu0 0.0
  %2269 = vmatpush1.msra.mxu0 0.0
  %2270 = vmatprep.subr.mxu0 0.0
  %2271 = vmatpush1.msra.mxu0 0.0
  %2272 = vmatprep.subr.mxu0 0.0
  %2273 = vmatpush1.msra.mxu0 0.0
  %2274 = vmatprep.subr.mxu0 0.0
  %2275 = vmatpush1.msra.mxu0 0.0
  %2276 = vmatprep.subr.mxu0 0.0
  %2277 = vmatpush1.msra.mxu0 0.0
  %2278 = vmatprep.subr.mxu0 0.0
  %2279 = vmatpush1.msra.mxu0 0.0
  %2280 = vmatprep.mubr.f32.mxu0 0.0
  %2281 = vmatmul.mubr.f32.gmra.mrb[0].mxu0 %v2121
  %v2282 = vpop.f32.mrb[0].mxu0
  %v2283 = vadd.f32 %v2118, %v2282
  %v2284 = vpop.f32.mrb[0].mxu0
  %2285 = vmatprep.mubr.f32.mxu0 0.0
  %2286 = vmatmul.mubr.f32.gmra.mrb[0].mxu0 %v2124
  %v2287 = vpop.f32.mrb[0].mxu0
  %v2288 = vadd.f32 %v2118, %v2287
  %v2289 = vpop.f32.mrb[0].mxu0
  %2290 = vmatprep.mubr.f32.mxu0 0.0
  %2291 = vmatmul.mubr.f32.gmra.mrb[0].mxu0 %v2127
  %v2292 = vpop.f32.mrb[0].mxu0
  %v2293 = vadd.f32 %v2118, %v2292
  %v2294 = vpop.f32.mrb[0].mxu0
  %2295 = vmatprep.mubr.f32.mxu0 0.0
  %2296 = vmatmul.mubr.f32.gmra.mrb[0].mxu0 %v2130
  %v2297 = vpop.f32.mrb[0].mxu0
  %v2298 = vadd.f32 %v2118, %v2297
  %v2299 = vpop.f32.mrb[0].mxu0
  %2300 = vmatprep.mubr.f32.mxu0 0.0
  %2301 = vmatmul.mubr.f32.gmra.mrb[0].mxu0 %v2133
  %v2302 = vpop.f32.mrb[0].mxu0
  %v2303 = vadd.f32 %v2118, %v2302
  %v2304 = vpop.f32.mrb[0].mxu0
  %2305 = vmatprep.mubr.f32.mxu0 0.0
  %2306 = vmatmul.mubr.f32.gmra.mrb[0].mxu0 %v2136
  %v2307 = vpop.f32.mrb[0].mxu0
  %v2308 = vadd.f32 %v2118, %v2307
  %v2309 = vpop.f32.mrb[0].mxu0
  %2310 = vmatprep.mubr.f32.mxu0 0.0
  %2311 = vmatmul.mubr.f32.gmra.mrb[0].mxu0 %v2139
  %v2312 = vpop.f32.mrb[0].mxu0
  %v2313 = vadd.f32 %v2118, %v2312
  %v2314 = vpop.f32.mrb[0].mxu0
  %2315 = vmatprep.mubr.f32.mxu0 0.0
  %2316 = vmatmul.mubr.f32.gmra.mrb[0].mxu0 %v2142
  %v2317 = vpop.f32.mrb[0].mxu0
  %v2318 = vadd.f32 %v2118, %v2317
  %v2319 = vpop.f32.mrb[0].mxu0
  %2320 = vmatprep.mubr.f32.mxu0 0.0
  %2321 = vmatmul.mubr.f32.gmra.mrb[0].mxu0 %v2145
  %v2322 = vpop.f32.mrb[0].mxu0
  %v2323 = vadd.f32 %v2118, %v2322
  %v2324 = vpop.f32.mrb[0].mxu0
  %2325 = vmatprep.mubr.f32.mxu0 0.0
  %2326 = vmatmul.mubr.f32.gmra.mrb[0].mxu0 %v2148
  %v2327 = vpop.f32.mrb[0].mxu0
  %v2328 = vadd.f32 %v2118, %v2327
  %v2329 = vpop.f32.mrb[0].mxu0
  %2330 = vmatprep.mubr.f32.mxu0 0.0
  %2331 = vmatmul.mubr.f32.gmra.mrb[0].mxu0 %v2151
  %v2332 = vpop.f32.mrb[0].mxu0
  %v2333 = vadd.f32 %v2118, %v2332
  %v2334 = vpop.f32.mrb[0].mxu0
  %2335 = vmatprep.mubr.f32.mxu0 0.0
  %2336 = vmatmul.mubr.f32.gmra.mrb[0].mxu0 %v2154
  %v2337 = vpop.f32.mrb[0].mxu0
  %v2338 = vadd.f32 %v2118, %v2337
  %v2339 = vpop.f32.mrb[0].mxu0
  %2340 = vmatprep.mubr.f32.mxu0 0.0
  %2341 = vmatmul.mubr.f32.gmra.mrb[0].mxu0 %v2157
  %v2342 = vpop.f32.mrb[0].mxu0
  %v2343 = vadd.f32 %v2118, %v2342
  %v2344 = vpop.f32.mrb[0].mxu0
  %2345 = vmatprep.mubr.f32.mxu0 0.0
  %2346 = vmatmul.mubr.f32.gmra.mrb[0].mxu0 %v2160
  %v2347 = vpop.f32.mrb[0].mxu0
  %v2348 = vadd.f32 %v2118, %v2347
  %v2349 = vpop.f32.mrb[0].mxu0
  %2350 = vmatprep.mubr.f32.mxu0 0.0
  %2351 = vmatmul.mubr.f32.gmra.mrb[0].mxu0 %v2163
  %v2352 = vpop.f32.mrb[0].mxu0
  %v2353 = vadd.f32 %v2118, %v2352
  %v2354 = vpop.f32.mrb[0].mxu0
  %2355 = vmatprep.mubr.f32.mxu0 0.0
  %2356 = vmatmul.mubr.f32.gmra.mrb[0].mxu0 %v2166
  %v2357 = vpop.f32.mrb[0].mxu0
  %v2358 = vadd.f32 %v2118, %v2357
  %v2359 = vpop.f32.mrb[0].mxu0
  %2360 = vmatprep.mubr.f32.mxu0 0.0
  %2361 = vmatmul.mubr.f32.gmra.mrb[0].mxu0 %v2169
  %v2362 = vpop.f32.mrb[0].mxu0
  %v2363 = vadd.f32 %v2118, %v2362
  %v2364 = vpop.f32.mrb[0].mxu0
  %2365 = vmatprep.mubr.f32.mxu0 0.0
  %2366 = vmatmul.mubr.f32.gmra.mrb[0].mxu0 %v2172
  %v2367 = vpop.f32.mrb[0].mxu0
  %v2368 = vadd.f32 %v2118, %v2367
  %v2369 = vpop.f32.mrb[0].mxu0
  %2370 = vmatprep.mubr.f32.mxu0 0.0
  %2371 = vmatmul.mubr.f32.gmra.mrb[0].mxu0 %v2175
  %v2372 = vpop.f32.mrb[0].mxu0
  %v2373 = vadd.f32 %v2118, %v2372
  %v2374 = vpop.f32.mrb[0].mxu0
  %2375 = vmatprep.mubr.f32.mxu0 0.0
  %2376 = vmatmul.mubr.f32.gmra.mrb[0].mxu0 %v2178
  %v2377 = vpop.f32.mrb[0].mxu0
  %v2378 = vadd.f32 %v2118, %v2377
  %v2379 = vpop.f32.mrb[0].mxu0
  %2380 = vmatprep.mubr.f32.mxu0 0.0
  %2381 = vmatmul.mubr.f32.gmra.mrb[0].mxu0 %v2181
  %v2382 = vpop.f32.mrb[0].mxu0
  %v2383 = vadd.f32 %v2118, %v2382
  %v2384 = vpop.f32.mrb[0].mxu0
  %2385 = vmatprep.mubr.f32.mxu0 0.0
  %2386 = vmatmul.mubr.f32.gmra.mrb[0].mxu0 %v2184
  %v2387 = vpop.f32.mrb[0].mxu0
  %v2388 = vadd.f32 %v2118, %v2387
  %v2389 = vpop.f32.mrb[0].mxu0
  %2390 = vmatprep.mubr.f32.mxu0 0.0
  %2391 = vmatmul.mubr.f32.gmra.mrb[0].mxu0 %v2187
  %v2392 = vpop.f32.mrb[0].mxu0
  %v2393 = vadd.f32 %v2118, %v2392
  %v2394 = vpop.f32.mrb[0].mxu0
  %2395 = vmatprep.mubr.f32.mxu0 0.0
  %2396 = vmatmul.mubr.f32.gmra.mrb[0].mxu0 %v2190
  %v2397 = vpop.f32.mrb[0].mxu0
  %v2398 = vadd.f32 %v2118, %v2397
  %v2399 = vpop.f32.mrb[0].mxu0
  %2400 = vmatprep.mubr.f32.mxu0 0.0
  %2401 = vmatmul.mubr.f32.gmra.mrb[0].mxu0 %v2193
  %v2402 = vpop.f32.mrb[0].mxu0
  %v2403 = vadd.f32 %v2118, %v2402
  %v2404 = vpop.f32.mrb[0].mxu0
  %2405 = vmatprep.mubr.f32.mxu0 0.0
  %2406 = vmatmul.mubr.f32.gmra.mrb[0].mxu0 %v2196
  %v2407 = vpop.f32.mrb[0].mxu0
  %v2408 = vadd.f32 %v2118, %v2407
  %v2409 = vpop.f32.mrb[0].mxu0
  %2410 = vmatprep.mubr.f32.mxu0 0.0
  %2411 = vmatmul.mubr.f32.gmra.mrb[0].mxu0 %v2199
  %v2412 = vpop.f32.mrb[0].mxu0
  %v2413 = vadd.f32 %v2118, %v2412
  %v2414 = vpop.f32.mrb[0].mxu0
  %2415 = vmatprep.mubr.f32.mxu0 0.0
  %2416 = vmatmul.mubr.f32.gmra.mrb[0].mxu0 %v2202
  %v2417 = vpop.f32.mrb[0].mxu0
  %v2418 = vadd.f32 %v2118, %v2417
  %v2419 = vpop.f32.mrb[0].mxu0
  %2420 = vmatprep.mubr.f32.mxu0 0.0
  %2421 = vmatmul.mubr.f32.gmra.mrb[0].mxu0 %v2205
  %v2422 = vpop.f32.mrb[0].mxu0
  %v2423 = vadd.f32 %v2118, %v2422
  %v2424 = vpop.f32.mrb[0].mxu0
  %2425 = vmatprep.mubr.f32.mxu0 0.0
  %2426 = vmatmul.mubr.f32.gmra.mrb[0].mxu0 %v2208
  %v2427 = vpop.f32.mrb[0].mxu0
  %v2428 = vadd.f32 %v2118, %v2427
  %v2429 = vpop.f32.mrb[0].mxu0
  %2430 = vmatprep.mubr.f32.mxu0 0.0
  %2431 = vmatmul.mubr.f32.gmra.mrb[0].mxu0 %v2211
  %v2432 = vpop.f32.mrb[0].mxu0
  %v2433 = vadd.f32 %v2118, %v2432
  %v2434 = vpop.f32.mrb[0].mxu0
  %2435 = vmatprep.mubr.f32.mxu0 0.0
  %2436 = vmatmul.mubr.f32.gmra.mrb[0].mxu0 %v2214
  %v2437 = vpop.f32.mrb[0].mxu0
  %v2438 = vadd.f32 %v2118, %v2437
  %v2439 = vpop.f32.mrb[0].mxu0
  %2440 = vdwg.mxu0
  %vm2441 = vcmask 64512
  %2442 = vst.msk [vmem:[%s15] sm:$0xff] %vm2441, %v2283
  %2443 = vst.msk [vmem:[%s15 + $0x8] sm:$0xff] %vm2441, %v2288
  %2444 = vst.msk [vmem:[%s15 + $0x10] sm:$0xff] %vm2441, %v2293
  %2445 = vst.msk [vmem:[%s15 + $0x18] sm:$0xff] %vm2441, %v2298
  %2446 = vst.msk [vmem:[%s15 + $0x20] sm:$0xff] %vm2441, %v2303
  %2447 = vst.msk [vmem:[%s15 + $0x28] sm:$0xff] %vm2441, %v2308
  %2448 = vst.msk [vmem:[%s15 + $0x30] sm:$0xff] %vm2441, %v2313
  %2449 = vst.msk [vmem:[%s15 + $0x38] sm:$0xff] %vm2441, %v2318
  %2450 = vst.msk [vmem:[%s15 + $0x40] sm:$0xff] %vm2441, %v2323
  %2451 = vst.msk [vmem:[%s15 + $0x48] sm:$0xff] %vm2441, %v2328
  %2452 = vst.msk [vmem:[%s15 + $0x50] sm:$0xff] %vm2441, %v2333
  %2453 = vst.msk [vmem:[%s15 + $0x58] sm:$0xff] %vm2441, %v2338
  %2454 = vst.msk [vmem:[%s15 + $0x60] sm:$0xff] %vm2441, %v2343
  %2455 = vst.msk [vmem:[%s15 + $0x68] sm:$0xff] %vm2441, %v2348
  %2456 = vst.msk [vmem:[%s15 + $0x70] sm:$0xff] %vm2441, %v2353
  %2457 = vst.msk [vmem:[%s15 + $0x78] sm:$0xff] %vm2441, %v2358
  %2458 = vst.msk [vmem:[%s15 + $0x80] sm:$0xff] %vm2441, %v2363
  %2459 = vst.msk [vmem:[%s15 + $0x88] sm:$0xff] %vm2441, %v2368
  %2460 = vst.msk [vmem:[%s15 + $0x90] sm:$0xff] %vm2441, %v2373
  %2461 = vst.msk [vmem:[%s15 + $0x98] sm:$0xff] %vm2441, %v2378
  %2462 = vst.msk [vmem:[%s15 + $0xa0] sm:$0xff] %vm2441, %v2383
  %2463 = vst.msk [vmem:[%s15 + $0xa8] sm:$0xff] %vm2441, %v2388
  %2464 = vst.msk [vmem:[%s15 + $0xb0] sm:$0xff] %vm2441, %v2393
  %2465 = vst.msk [vmem:[%s15 + $0xb8] sm:$0xff] %vm2441, %v2398
  %2466 = vst.msk [vmem:[%s15 + $0xc0] sm:$0xff] %vm2441, %v2403
  %2467 = vst.msk [vmem:[%s15 + $0xc8] sm:$0xff] %vm2441, %v2408
  %2468 = vst.msk [vmem:[%s15 + $0xd0] sm:$0xff] %vm2441, %v2413
  %2469 = vst.msk [vmem:[%s15 + $0xd8] sm:$0xff] %vm2441, %v2418
  %2470 = vst.msk [vmem:[%s15 + $0xe0] sm:$0xff] %vm2441, %v2423
  %2471 = vst.msk [vmem:[%s15 + $0xe8] sm:$0xff] %vm2441, %v2428
  %2472 = vst.msk [vmem:[%s15 + $0xf0] sm:$0xff] %vm2441, %v2433
  %2473 = vst.msk [vmem:[%s15 + $0xf8] sm:$0xff] %vm2441, %v2438
  // Predicated region
  $region62: #{forward_pallas.1} parent=0 // pred_check
    _
  $region63: #{forward_pallas.1} parent=0 // pred_check_branch
    %2475 = sbr.rel (0) target = $region65
  $region64: #{forward_pallas.1} parent=0 // pred_region
    _
  $region65: #{forward_pallas.1} parent=0 // pred_fallthru
    _
  // Predicated region
  $region66: #{forward_pallas.1} parent=0 // pred_check
    _
  $region67: #{forward_pallas.1} parent=0 // pred_check_branch
    %2477 = sbr.rel (0) target = $region69
  $region68: #{forward_pallas.1} parent=0 // pred_region
    _
  $region69: #{forward_pallas.1} parent=0 // pred_fallthru
    _

</llo_original>
